<compile_context>
chip_gen: v7x
topology: tpu7x:2x2x1
jax: 0.10.0
libtpu: 0.0.40
codegen_flags: <defaults>
</compile_context>

<pallas_src>
import functools
import math

import jax
import jax.numpy as jnp
from jax import lax
from jax.experimental import pallas as pl
from jax.experimental.pallas import tpu as pltpu


def _pair(v):
    if isinstance(v, (tuple, list)):
        return tuple(v)
    return (v, v)


def _round_up(a, b):
    return -(-a // b) * b


def _tpu_caps():
    """Returns (physical VMEM bytes, True if multi-TensorCore chip, e.g. v7x)."""
    vmem_cap = 64 << 20            # conservative default (v7x per-core VMEM)
    multi_core = False
    try:
        info = pltpu.get_tpu_info()
        vmem_cap = int(getattr(info, "vmem_capacity_bytes", vmem_cap))
    except Exception:
        pass
    try:
        kind = jax.devices()[0].device_kind.lower()
        multi_core = "v7" in kind  # v7x: 2 TensorCores share the parallel axis
    except Exception:
        pass
    return vmem_cap, multi_core


def _choose_tile_m(M, rows_in, rows_out, halo_w, vmem_cap, multi_core,
                   max_tm=2048):
    """Largest lane tile (multiple of halo_w, <= max_tm) fitting a VMEM budget.

    On single-TC chips (v5e/v6e) the grid is a serial loop, so we simply take
    the biggest tile.  On multi-TC chips (v7x) we additionally make sure there
    are >= 2 grid steps so both TensorCores get work."""
    q = halo_w
    m_q = _round_up(max(M, 1), q)
    tm = min(max(q, (max_tm // q) * q), m_q)
    budget = int(vmem_cap * 0.45)

    def need(t):
        return 4 * (2 * rows_in * t          # main input, double buffered
                    + 2 * rows_in * halo_w   # halo input, double buffered
                    + 2 * rows_out * t       # output, double buffered
                    + rows_in * (t + halo_w)  # in-kernel slab value
                    + 2 * rows_out * t)      # accumulator / spill headroom

    while tm > q and need(tm) > budget:
        tm -= q
    if multi_core and m_q // tm < 2 and m_q >= 2 * q:
        tm = max(q, _round_up(m_q // 2, q))
    return tm


# ----------------------------- Pallas kernel --------------------------------
def _rv_conv_kernel(xm_ref, xh_ref, w_ref, b_ref, o_ref, *, tap_offsets, c_out):
    """One lane-dense M tile of the fused random-variable conv.

    xm_ref : (R_in, tm)        main slab of the flattened padded input
                               rows = [mean channels | var channels | zero pad]
    xh_ref : (R_in, halo_w)    halo = the next halo_w flat columns
    w_ref  : (T, R_out, R_in)  per-tap block-diagonal weights:
                               rows [0:C_out)      x cols [0:C_in)      = W(tap)
                               rows [C_out:2C_out) x cols [C_in:2C_in)  = W(tap)^2
    b_ref  : (R_out, 1)        bias on rows [0:C_out), zero elsewhere
    o_ref  : (R_out, tm)       rows [0:C_out)=mean, [C_out:2C_out)=|var|
    """
    tm = o_ref.shape[1]
    rows_out = o_ref.shape[0]
    # main tile || halo -> one slab that covers every tap's shifted window.
    slab = jnp.concatenate([xm_ref[...], xh_ref[...]], axis=-1)
    acc = jnp.zeros((rows_out, tm), jnp.float32)
    for t, off in enumerate(tap_offsets):        # static, unrolled tap loop
        acc = acc + jnp.dot(w_ref[t], slab[:, off:off + tm],
                            preferred_element_type=jnp.float32)
    acc = acc + b_ref[...]                       # bias rows only (rest are 0)
    row = lax.broadcasted_iota(jnp.int32, (rows_out, tm), 0)
    is_var = (row >= c_out) & (row < 2 * c_out)
    o_ref[...] = jnp.where(is_var, jnp.abs(acc), acc)


def _rv_conv_core(x_flat, w_taps, bias_col, *, tile_m, halo_w, tap_offsets,
                  c_out, m_pad, vmem_cap):
    """x_flat: (R_in, m_pad + halo_w) f32, w_taps: (T, R_out, R_in) f32,
    bias_col: (R_out, 1) f32  ->  (R_out, m_pad) f32."""
    rows_in = x_flat.shape[0]
    num_taps, rows_out, _ = w_taps.shape
    grid = (m_pad // tile_m,)

    need = 4 * (2 * rows_in * tile_m + 2 * rows_in * halo_w
                + 2 * rows_out * tile_m + rows_in * (tile_m + halo_w)
                + 2 * rows_out * tile_m
                + 2 * num_taps * rows_out * rows_in) + (2 << 20)
    vmem_limit = int(min(max(32 << 20, 2 * need), int(0.8 * vmem_cap)))
    vmem_limit = max(vmem_limit, need)

    kernel = functools.partial(
        _rv_conv_kernel,
        tap_offsets=tuple(int(o) for o in tap_offsets),
        c_out=c_out)
    halo_blocks = tile_m // halo_w               # tile_m is a multiple of halo_w

    return pl.pallas_call(
        kernel,
        out_shape=jax.ShapeDtypeStruct((rows_out, m_pad), jnp.float32),
        grid_spec=pltpu.PrefetchScalarGridSpec(
            num_scalar_prefetch=0,
            grid=grid,
            in_specs=[
                pl.BlockSpec((rows_in, tile_m), lambda i: (0, i)),
                pl.BlockSpec((rows_in, halo_w),
                             lambda i: (0, (i + 1) * halo_blocks)),
                pl.BlockSpec((num_taps, rows_out, rows_in),
                             lambda i: (0, 0, 0)),
                pl.BlockSpec((rows_out, 1), lambda i: (0, 0)),
            ],
            out_specs=pl.BlockSpec((rows_out, tile_m), lambda i: (0, i)),
        ),
        compiler_params=pltpu.CompilerParams(
            dimension_semantics=("parallel",),
            vmem_limit_bytes=vmem_limit,
        ),
    )(x_flat, x_flat, w_taps, bias_col)          # x passed twice: main + halo view


# ------------------------------- forward -------------------------------------
def random_variable_conv2d(x, weight, bias=None, *, stride=1, padding=0,
                           dilation=1, groups=1, padding_mode="zeros"):
    """Forward pass of RandomVariableConv2d.

    x      : (N, 2, C_in, H, W)  (dim 1 = [mean, variance])
    weight : (C_out, C_in, kh, kw),  bias : (C_out,) or None
    returns: (N, 2, C_out, H_out, W_out)
      out_mean = conv2d(x_mean, W) + bias
      out_var  = | conv2d(x_var, W*W) |
    """
    # TODO(synk): groups != 1 and padding_mode != 'zeros' are not implemented.
    assert groups == 1, "groups != 1 not implemented"
    assert padding_mode == "zeros", "only padding_mode='zeros' implemented"
    stride, padding, dilation = _pair(stride), _pair(padding), _pair(dilation)
    sh, sw = stride
    ph, pw = padding
    dh, dw = dilation

    N, two, C_in, H, W = x.shape
    assert two == 2
    C_out, C_in_w, kh, kw = weight.shape
    assert C_in_w == C_in
    Ho = (H + 2 * ph - dh * (kh - 1) - 1) // sh + 1
    Wo = (W + 2 * pw - dw * (kw - 1) - 1) // sw + 1

    vmem_cap, multi_core = _tpu_caps()
    co2 = _round_up(2 * C_out, 8)

    bias_vec = (jnp.zeros((C_out,), jnp.float32) if bias is None
                else bias.astype(jnp.float32))
    b2 = jnp.zeros((co2, 1), jnp.float32).at[:C_out, 0].set(bias_vec)

    # Permute the 1x-sized input once so (mean|var, channel) leads and the
    # flattened batch*spatial axis sits on lanes; zero-pad the spatial dims.
    x2 = jnp.asarray(x, jnp.float32).transpose(1, 2, 0, 3, 4)   # (2,C,N,H,W)
    x2 = jnp.pad(x2, ((0, 0), (0, 0), (0, 0), (ph, ph), (pw, pw)))
    Hp, Wp = H + 2 * ph, W + 2 * pw

    if (sh, sw) == (1, 1):
        # ---- fused-im2col path: taps are constant flat shifts of the input.
        cp2 = _round_up(2 * C_in, 8)
        M = N * Hp * Wp
        offs = [ki * dh * Wp + kj * dw for ki in range(kh) for kj in range(kw)]
        halo_w = max(128, _round_up(max(offs[-1], 1), 128))
        tm = _choose_tile_m(M, cp2, co2, halo_w, vmem_cap, multi_core)
        steps = -(-M // tm)
        if multi_core and steps > 1 and steps % 2 == 1:
            steps += 1                       # equal work for both v7x cores
        m_pad = steps * tm

        x_flat = x2.reshape(2 * C_in, M)
        x_flat = jnp.pad(x_flat, ((0, cp2 - 2 * C_in),
                                  (0, m_pad + halo_w - M)))

        wt = jnp.transpose(
            jnp.asarray(weight, jnp.float32).reshape(C_out, C_in, kh * kw),
            (2, 0, 1))                                        # (T, C_out, C_in)
        wbd = jnp.zeros((kh * kw, co2, cp2), jnp.float32)
        wbd = wbd.at[:, :C_out, :C_in].set(wt)
        wbd = wbd.at[:, C_out:2 * C_out, C_in:2 * C_in].set(wt * wt)

        out = _rv_conv_core(x_flat, wbd, b2, tile_m=tm, halo_w=halo_w,
                            tap_offsets=offs, c_out=C_out, m_pad=m_pad,
                            vmem_cap=vmem_cap)
        y = out[:2 * C_out, :M].reshape(2, C_out, N, Hp, Wp)
        return y[:, :, :, :Ho, :Wo].transpose(2, 0, 1, 3, 4)

    # ---- strided fallback: im2col built directly in GEMM layout (channel-major
    # permute happened on the 1x input above, so no transpose of the amplified
    # patches array), then the same block-diagonal kernel with a single tap.
    K = C_in * kh * kw
    k2 = _round_up(2 * K, 8)
    M = N * Ho * Wo
    halo_w = 128
    tm = _choose_tile_m(M, k2, co2, halo_w, vmem_cap, multi_core)
    steps = -(-M // tm)
    if multi_core and steps > 1 and steps % 2 == 1:
        steps += 1
    m_pad = steps * tm

    cols = []
    for ki in range(kh):
        for kj in range(kw):
            cols.append(x2[:, :, :,
                           ki * dh: ki * dh + sh * (Ho - 1) + 1: sh,
                           kj * dw: kj * dw + sw * (Wo - 1) + 1: sw])
    p = jnp.stack(cols, axis=2)                 # (2, C, T, N, Ho, Wo)
    p = p.reshape(2 * K, M)                     # K order = (c, ki, kj)
    p = jnp.pad(p, ((0, k2 - 2 * K), (0, m_pad + halo_w - M)))

    wf = jnp.asarray(weight, jnp.float32).reshape(C_out, K)
    wbd = jnp.zeros((1, co2, k2), jnp.float32)
    wbd = wbd.at[0, :C_out, :K].set(wf)
    wbd = wbd.at[0, C_out:2 * C_out, K:2 * K].set(wf * wf)

    out = _rv_conv_core(p, wbd, b2, tile_m=tm, halo_w=halo_w,
                        tap_offsets=[0], c_out=C_out, m_pad=m_pad,
                        vmem_cap=vmem_cap)
    y = out[:2 * C_out, :M].reshape(2, C_out, N, Ho, Wo)
    return y.transpose(2, 0, 1, 3, 4)


# ------------------------------ reference ------------------------------------
def _reference(x, weight, bias, stride, padding, dilation):
    dn = lax.conv_dimension_numbers(x[:, 0].shape, weight.shape,
                                    ("NCHW", "OIHW", "NCHW"))
    pad = [(padding[0], padding[0]), (padding[1], padding[1])]
    om = lax.conv_general_dilated(x[:, 0], weight, stride, pad,
                                  rhs_dilation=dilation, dimension_numbers=dn)
    om = om + bias[None, :, None, None]
    ov = lax.conv_general_dilated(x[:, 1], weight * weight, stride, pad,
                                  rhs_dilation=dilation, dimension_numbers=dn)
    return jnp.stack([om, jnp.abs(ov)], axis=1)


# --------------------------------- main ---------------------------------------
if __name__ == "__main__":
    N, C_in, C_out = 2, 4, 8
    H = W = 16
    kh = kw = 3
    stride, padding, dilation = (1, 1), (1, 1), (1, 1)

    key = jax.random.PRNGKey(0)
    k_x, k_w, k_b = jax.random.split(key, 3)

    # kaiming_uniform_(a=sqrt(5)) equivalent bound: 1/sqrt(fan_in).
    fan_in = C_in * kh * kw
    bound = 1.0 / math.sqrt(fan_in)
    weight = jax.random.uniform(k_w, (C_out, C_in, kh, kw), jnp.float32,
                                minval=-bound, maxval=bound)
    bias = jax.random.uniform(k_b, (C_out,), jnp.float32,
                              minval=-bound, maxval=bound)

    x_mean = jax.random.normal(k_x, (N, C_in, H, W), jnp.float32)
    x_var = jnp.abs(jax.random.normal(jax.random.fold_in(k_x, 1),
                                      (N, C_in, H, W), jnp.float32))
    x = jnp.stack([x_mean, x_var], axis=1)                # (N, 2, C_in, H, W)

    fwd = jax.jit(functools.partial(random_variable_conv2d, stride=stride,
                                    padding=padding, dilation=dilation))
    out = jax.block_until_ready(fwd(x, weight, bias))
    ref = _reference(x, weight, bias, stride, padding, dilation)
    assert out.shape == (N, 2, C_out, H, W), out.shape
    assert jnp.allclose(out, ref, atol=1e-4, rtol=1e-4), float(
        jnp.max(jnp.abs(out - ref)))

    # Also exercise the strided (im2col GEMM) fallback path.
    fwd_s = jax.jit(functools.partial(random_variable_conv2d, stride=(2, 2),
                                      padding=padding, dilation=dilation))
    out_s = jax.block_until_ready(fwd_s(x, weight, bias))
    ref_s = _reference(x, weight, bias, (2, 2), padding, dilation)
    assert out_s.shape == ref_s.shape, (out_s.shape, ref_s.shape)
    assert jnp.allclose(out_s, ref_s, atol=1e-4, rtol=1e-4), float(
        jnp.max(jnp.abs(out_s - ref_s)))

    print("KERNEL_OK")
</pallas_src>

<mosaic_0001>
module attributes {stable_mosaic.version = 11 : i64} {
  func.func @_rv_conv_kernel(%arg0: i32, %arg1: memref<8x768xf32, #tpu.memory_space<vmem>>, %arg2: memref<8x128xf32, #tpu.memory_space<vmem>>, %arg3: memref<9x16x8xf32, #tpu.memory_space<vmem>>, %arg4: memref<16x1xf32, #tpu.memory_space<vmem>>, %arg5: memref<16x768xf32, #tpu.memory_space<vmem>>) attributes {dimension_semantics = [#tpu.dimension_semantics<parallel>], iteration_bounds = array<i64: 1>, scalar_prefetch = 0 : i64, scratch_operands = 0 : i64, tpu.core_type = #tpu.core_type<tc>, window_params = [{transform_indices = @transform_0, window_bounds = array<i64: 8, 768>}, {transform_indices = @transform_1, window_bounds = array<i64: 8, 128>}, {pipeline_mode = #tpu.pipeline_mode<synchronous>, transform_indices = @transform_2, window_bounds = array<i64: 9, 16, 8>}, {pipeline_mode = #tpu.pipeline_mode<synchronous>, transform_indices = @transform_3, window_bounds = array<i64: 16, 1>}, {transform_indices = @transform_4, window_bounds = array<i64: 16, 768>}]} {
    %c0 = arith.constant 0 : index
    %c0_0 = arith.constant 0 : index
    %0 = vector.load %arg1[%c0, %c0_0] : memref<8x768xf32, #tpu.memory_space<vmem>>, vector<8x768xf32>
    %c0_1 = arith.constant 0 : index
    %c0_2 = arith.constant 0 : index
    %1 = vector.load %arg2[%c0_1, %c0_2] : memref<8x128xf32, #tpu.memory_space<vmem>>, vector<8x128xf32>
    %2 = tpu.concatenate %0, %1 in 1 : vector<8x768xf32>, vector<8x128xf32> -> vector<8x896xf32>
    %cst = arith.constant 0.000000e+00 : f32
    %3 = vector.broadcast %cst : f32 to vector<16x768xf32>
    %c0_3 = arith.constant 0 : index
    %c0_4 = arith.constant 0 : index
    %c0_5 = arith.constant 0 : index
    %4 = vector.load %arg3[%c0_3, %c0_4, %c0_5] : memref<9x16x8xf32, #tpu.memory_space<vmem>>, vector<1x16x8xf32>
    %5 = vector.shape_cast %4 : vector<1x16x8xf32> to vector<16x8xf32>
    %6 = vector.extract_strided_slice %2 {offsets = [0, 0], sizes = [8, 768], strides = [1, 1]} : vector<8x896xf32> to vector<8x768xf32>
    %cst_6 = arith.constant dense<0.000000e+00> : vector<16x768xf32>
    %7 = tpu.matmul %5, %6, %cst_6 {dimension_numbers = #tpu.dot_dimension_numbers<[1], [0], [0], [1], [0, 0, 1, 1], [], []>} : vector<16x8xf32>, vector<8x768xf32>, vector<16x768xf32> -> vector<16x768xf32>
    %8 = arith.addf %3, %7 : vector<16x768xf32>
    %c1 = arith.constant 1 : index
    %c0_7 = arith.constant 0 : index
    %c0_8 = arith.constant 0 : index
    %9 = vector.load %arg3[%c1, %c0_7, %c0_8] : memref<9x16x8xf32, #tpu.memory_space<vmem>>, vector<1x16x8xf32>
    %10 = vector.shape_cast %9 : vector<1x16x8xf32> to vector<16x8xf32>
    %11 = vector.extract_strided_slice %2 {offsets = [0, 1], sizes = [8, 768], strides = [1, 1]} : vector<8x896xf32> to vector<8x768xf32>
    %cst_9 = arith.constant dense<0.000000e+00> : vector<16x768xf32>
    %12 = tpu.matmul %10, %11, %cst_9 {dimension_numbers = #tpu.dot_dimension_numbers<[1], [0], [0], [1], [0, 0, 1, 1], [], []>} : vector<16x8xf32>, vector<8x768xf32>, vector<16x768xf32> -> vector<16x768xf32>
    %13 = arith.addf %8, %12 : vector<16x768xf32>
    %c2 = arith.constant 2 : index
    %c0_10 = arith.constant 0 : index
    %c0_11 = arith.constant 0 : index
    %14 = vector.load %arg3[%c2, %c0_10, %c0_11] : memref<9x16x8xf32, #tpu.memory_space<vmem>>, vector<1x16x8xf32>
    %15 = vector.shape_cast %14 : vector<1x16x8xf32> to vector<16x8xf32>
    %16 = vector.extract_strided_slice %2 {offsets = [0, 2], sizes = [8, 768], strides = [1, 1]} : vector<8x896xf32> to vector<8x768xf32>
    %cst_12 = arith.constant dense<0.000000e+00> : vector<16x768xf32>
    %17 = tpu.matmul %15, %16, %cst_12 {dimension_numbers = #tpu.dot_dimension_numbers<[1], [0], [0], [1], [0, 0, 1, 1], [], []>} : vector<16x8xf32>, vector<8x768xf32>, vector<16x768xf32> -> vector<16x768xf32>
    %18 = arith.addf %13, %17 : vector<16x768xf32>
    %c3 = arith.constant 3 : index
    %c0_13 = arith.constant 0 : index
    %c0_14 = arith.constant 0 : index
    %19 = vector.load %arg3[%c3, %c0_13, %c0_14] : memref<9x16x8xf32, #tpu.memory_space<vmem>>, vector<1x16x8xf32>
    %20 = vector.shape_cast %19 : vector<1x16x8xf32> to vector<16x8xf32>
    %21 = vector.extract_strided_slice %2 {offsets = [0, 18], sizes = [8, 768], strides = [1, 1]} : vector<8x896xf32> to vector<8x768xf32>
    %cst_15 = arith.constant dense<0.000000e+00> : vector<16x768xf32>
    %22 = tpu.matmul %20, %21, %cst_15 {dimension_numbers = #tpu.dot_dimension_numbers<[1], [0], [0], [1], [0, 0, 1, 1], [], []>} : vector<16x8xf32>, vector<8x768xf32>, vector<16x768xf32> -> vector<16x768xf32>
    %23 = arith.addf %18, %22 : vector<16x768xf32>
    %c4 = arith.constant 4 : index
    %c0_16 = arith.constant 0 : index
    %c0_17 = arith.constant 0 : index
    %24 = vector.load %arg3[%c4, %c0_16, %c0_17] : memref<9x16x8xf32, #tpu.memory_space<vmem>>, vector<1x16x8xf32>
    %25 = vector.shape_cast %24 : vector<1x16x8xf32> to vector<16x8xf32>
    %26 = vector.extract_strided_slice %2 {offsets = [0, 19], sizes = [8, 768], strides = [1, 1]} : vector<8x896xf32> to vector<8x768xf32>
    %cst_18 = arith.constant dense<0.000000e+00> : vector<16x768xf32>
    %27 = tpu.matmul %25, %26, %cst_18 {dimension_numbers = #tpu.dot_dimension_numbers<[1], [0], [0], [1], [0, 0, 1, 1], [], []>} : vector<16x8xf32>, vector<8x768xf32>, vector<16x768xf32> -> vector<16x768xf32>
    %28 = arith.addf %23, %27 : vector<16x768xf32>
    %c5 = arith.constant 5 : index
    %c0_19 = arith.constant 0 : index
    %c0_20 = arith.constant 0 : index
    %29 = vector.load %arg3[%c5, %c0_19, %c0_20] : memref<9x16x8xf32, #tpu.memory_space<vmem>>, vector<1x16x8xf32>
    %30 = vector.shape_cast %29 : vector<1x16x8xf32> to vector<16x8xf32>
    %31 = vector.extract_strided_slice %2 {offsets = [0, 20], sizes = [8, 768], strides = [1, 1]} : vector<8x896xf32> to vector<8x768xf32>
    %cst_21 = arith.constant dense<0.000000e+00> : vector<16x768xf32>
    %32 = tpu.matmul %30, %31, %cst_21 {dimension_numbers = #tpu.dot_dimension_numbers<[1], [0], [0], [1], [0, 0, 1, 1], [], []>} : vector<16x8xf32>, vector<8x768xf32>, vector<16x768xf32> -> vector<16x768xf32>
    %33 = arith.addf %28, %32 : vector<16x768xf32>
    %c6 = arith.constant 6 : index
    %c0_22 = arith.constant 0 : index
    %c0_23 = arith.constant 0 : index
    %34 = vector.load %arg3[%c6, %c0_22, %c0_23] : memref<9x16x8xf32, #tpu.memory_space<vmem>>, vector<1x16x8xf32>
    %35 = vector.shape_cast %34 : vector<1x16x8xf32> to vector<16x8xf32>
    %36 = vector.extract_strided_slice %2 {offsets = [0, 36], sizes = [8, 768], strides = [1, 1]} : vector<8x896xf32> to vector<8x768xf32>
    %cst_24 = arith.constant dense<0.000000e+00> : vector<16x768xf32>
    %37 = tpu.matmul %35, %36, %cst_24 {dimension_numbers = #tpu.dot_dimension_numbers<[1], [0], [0], [1], [0, 0, 1, 1], [], []>} : vector<16x8xf32>, vector<8x768xf32>, vector<16x768xf32> -> vector<16x768xf32>
    %38 = arith.addf %33, %37 : vector<16x768xf32>
    %c7 = arith.constant 7 : index
    %c0_25 = arith.constant 0 : index
    %c0_26 = arith.constant 0 : index
    %39 = vector.load %arg3[%c7, %c0_25, %c0_26] : memref<9x16x8xf32, #tpu.memory_space<vmem>>, vector<1x16x8xf32>
    %40 = vector.shape_cast %39 : vector<1x16x8xf32> to vector<16x8xf32>
    %41 = vector.extract_strided_slice %2 {offsets = [0, 37], sizes = [8, 768], strides = [1, 1]} : vector<8x896xf32> to vector<8x768xf32>
    %cst_27 = arith.constant dense<0.000000e+00> : vector<16x768xf32>
    %42 = tpu.matmul %40, %41, %cst_27 {dimension_numbers = #tpu.dot_dimension_numbers<[1], [0], [0], [1], [0, 0, 1, 1], [], []>} : vector<16x8xf32>, vector<8x768xf32>, vector<16x768xf32> -> vector<16x768xf32>
    %43 = arith.addf %38, %42 : vector<16x768xf32>
    %c8 = arith.constant 8 : index
    %c0_28 = arith.constant 0 : index
    %c0_29 = arith.constant 0 : index
    %44 = vector.load %arg3[%c8, %c0_28, %c0_29] : memref<9x16x8xf32, #tpu.memory_space<vmem>>, vector<1x16x8xf32>
    %45 = vector.shape_cast %44 : vector<1x16x8xf32> to vector<16x8xf32>
    %46 = vector.extract_strided_slice %2 {offsets = [0, 38], sizes = [8, 768], strides = [1, 1]} : vector<8x896xf32> to vector<8x768xf32>
    %cst_30 = arith.constant dense<0.000000e+00> : vector<16x768xf32>
    %47 = tpu.matmul %45, %46, %cst_30 {dimension_numbers = #tpu.dot_dimension_numbers<[1], [0], [0], [1], [0, 0, 1, 1], [], []>} : vector<16x8xf32>, vector<8x768xf32>, vector<16x768xf32> -> vector<16x768xf32>
    %48 = arith.addf %43, %47 : vector<16x768xf32>
    %c0_31 = arith.constant 0 : index
    %c0_32 = arith.constant 0 : index
    %49 = vector.load %arg4[%c0_31, %c0_32] : memref<16x1xf32, #tpu.memory_space<vmem>>, vector<16x1xf32>
    %50 = vector.broadcast %49 : vector<16x1xf32> to vector<16x768xf32>
    %51 = arith.addf %48, %50 : vector<16x768xf32>
    %52 = tpu.iota {dimensions = array<i32: 0>} : vector<16x768xi32>
    %c8_i32 = arith.constant 8 : i32
    %53 = vector.broadcast %c8_i32 : i32 to vector<16x768xi32>
    %54 = arith.cmpi sge, %52, %53 : vector<16x768xi32>
    %c16_i32 = arith.constant 16 : i32
    %55 = vector.broadcast %c16_i32 : i32 to vector<16x768xi32>
    %56 = arith.cmpi slt, %52, %55 : vector<16x768xi32>
    %57 = arith.andi %54, %56 : vector<16x768xi1>
    %58 = math.absf %51 : vector<16x768xf32>
    %59 = arith.select %57, %58, %51 : vector<16x768xi1>, vector<16x768xf32>
    %c0_33 = arith.constant 0 : index
    %c0_34 = arith.constant 0 : index
    %60 = vector.load %arg5[%c0_33, %c0_34] : memref<16x768xf32, #tpu.memory_space<vmem>>, vector<16x768xf32>
    tpu.vector_store %arg5[%c0_33, %c0_34], %59 {strides = array<i32>} : memref<16x768xf32, #tpu.memory_space<vmem>>, vector<16x768xf32>,
    return
  }
  func.func @transform_0(%arg0: i32) -> (i32, i32) {
    %c0_i32 = arith.constant 0 : i32
    %c0_i32_0 = arith.constant 0 : i32
    return %c0_i32, %arg0 : i32, i32
  }
  func.func @transform_1(%arg0: i32) -> (i32, i32) {
    %c1_i32 = arith.constant 1 : i32
    %0 = arith.addi %arg0, %c1_i32 : i32
    %c6_i32 = arith.constant 6 : i32
    %1 = arith.muli %0, %c6_i32 : i32
    %c0_i32 = arith.constant 0 : i32
    %c0_i32_0 = arith.constant 0 : i32
    return %c0_i32, %1 : i32, i32
  }
  func.func @transform_2(%arg0: i32) -> (i32, i32, i32) {
    %c0_i32 = arith.constant 0 : i32
    %c0_i32_0 = arith.constant 0 : i32
    %c0_i32_1 = arith.constant 0 : i32
    %c0_i32_2 = arith.constant 0 : i32
    return %c0_i32, %c0_i32_0, %c0_i32_1 : i32, i32, i32
  }
  func.func @transform_3(%arg0: i32) -> (i32, i32) {
    %c0_i32 = arith.constant 0 : i32
    %c0_i32_0 = arith.constant 0 : i32
    %c0_i32_1 = arith.constant 0 : i32
    return %c0_i32, %c0_i32_0 : i32, i32
  }
  func.func @transform_4(%arg0: i32) -> (i32, i32) {
    %c0_i32 = arith.constant 0 : i32
    %c0_i32_0 = arith.constant 0 : i32
    return %c0_i32, %arg0 : i32, i32
  }
}

</mosaic_0001>

<llo_original>
// kernel: mul.1
$region0: #{mul.1}
  #allocation0 [shape = 's32[1]{0}', space=sflag, size = 0x4, scoped, tag = 'scoped memory for mul.1']
  %s0 = inlined_call_operand.vmem [shape: f32[9,8,4], index: 0, kind: input, shape index: {}, may-alias: {0,1}]
  %s1 = inlined_call_operand.vmem [shape: f32[9,8,4], index: 1, kind: input, shape index: {}, may-alias: {0,1}]
  %s2 = inlined_call_operand.vmem [shape: f32[9,8,4], index: 2, kind: output, shape index: {}]
  %v3 = vld [vmem:[%s0] sm:$0xff]
  %v4 = vld [vmem:[%s1] sm:$0xff]
  %5 = xla_tuple %v3, %v4
  %6 = xla_tuple %5
  %v7 = vmul.f32 %v3, %v4
  %8 = xla_tuple %v7
  %9 = vst [vmem:[%s2] sm:$0xff] %v7
  %s10 = scalar_lea.vmem %s0, 8
  %v11 = vld [vmem:[%s10] sm:$0xff]
  %s12 = scalar_lea.vmem %s1, 8
  %v13 = vld [vmem:[%s12] sm:$0xff]
  %14 = xla_tuple %v11, %v13
  %15 = xla_tuple %14
  %v16 = vmul.f32 %v11, %v13
  %17 = xla_tuple %v16
  %s18 = scalar_lea.vmem %s2, 8
  %19 = vst [vmem:[%s18] sm:$0xff] %v16
  %s20 = scalar_lea.vmem %s0, 16
  %v21 = vld [vmem:[%s20] sm:$0xff]
  %s22 = scalar_lea.vmem %s1, 16
  %v23 = vld [vmem:[%s22] sm:$0xff]
  %24 = xla_tuple %v21, %v23
  %25 = xla_tuple %24
  %v26 = vmul.f32 %v21, %v23
  %27 = xla_tuple %v26
  %s28 = scalar_lea.vmem %s2, 16
  %29 = vst [vmem:[%s28] sm:$0xff] %v26
  %s30 = scalar_lea.vmem %s0, 24
  %v31 = vld [vmem:[%s30] sm:$0xff]
  %s32 = scalar_lea.vmem %s1, 24
  %v33 = vld [vmem:[%s32] sm:$0xff]
  %34 = xla_tuple %v31, %v33
  %35 = xla_tuple %34
  %v36 = vmul.f32 %v31, %v33
  %37 = xla_tuple %v36
  %s38 = scalar_lea.vmem %s2, 24
  %39 = vst [vmem:[%s38] sm:$0xff] %v36
  %s40 = scalar_lea.vmem %s0, 32
  %v41 = vld [vmem:[%s40] sm:$0xff]
  %s42 = scalar_lea.vmem %s1, 32
  %v43 = vld [vmem:[%s42] sm:$0xff]
  %44 = xla_tuple %v41, %v43
  %45 = xla_tuple %44
  %v46 = vmul.f32 %v41, %v43
  %47 = xla_tuple %v46
  %s48 = scalar_lea.vmem %s2, 32
  %49 = vst [vmem:[%s48] sm:$0xff] %v46
  %s50 = scalar_lea.vmem %s0, 40
  %v51 = vld [vmem:[%s50] sm:$0xff]
  %s52 = scalar_lea.vmem %s1, 40
  %v53 = vld [vmem:[%s52] sm:$0xff]
  %54 = xla_tuple %v51, %v53
  %55 = xla_tuple %54
  %v56 = vmul.f32 %v51, %v53
  %57 = xla_tuple %v56
  %s58 = scalar_lea.vmem %s2, 40
  %59 = vst [vmem:[%s58] sm:$0xff] %v56
  %s60 = scalar_lea.vmem %s0, 48
  %v61 = vld [vmem:[%s60] sm:$0xff]
  %s62 = scalar_lea.vmem %s1, 48
  %v63 = vld [vmem:[%s62] sm:$0xff]
  %64 = xla_tuple %v61, %v63
  %65 = xla_tuple %64
  %v66 = vmul.f32 %v61, %v63
  %67 = xla_tuple %v66
  %s68 = scalar_lea.vmem %s2, 48
  %69 = vst [vmem:[%s68] sm:$0xff] %v66
  %s70 = scalar_lea.vmem %s0, 56
  %v71 = vld [vmem:[%s70] sm:$0xff]
  %s72 = scalar_lea.vmem %s1, 56
  %v73 = vld [vmem:[%s72] sm:$0xff]
  %74 = xla_tuple %v71, %v73
  %75 = xla_tuple %74
  %v76 = vmul.f32 %v71, %v73
  %77 = xla_tuple %v76
  %s78 = scalar_lea.vmem %s2, 56
  %79 = vst [vmem:[%s78] sm:$0xff] %v76
  %s80 = scalar_lea.vmem %s0, 64
  %v81 = vld [vmem:[%s80] sm:$0xff]
  %s82 = scalar_lea.vmem %s1, 64
  %v83 = vld [vmem:[%s82] sm:$0xff]
  %84 = xla_tuple %v81, %v83
  %85 = xla_tuple %84
  %v86 = vmul.f32 %v81, %v83
  %87 = xla_tuple %v86
  %s88 = scalar_lea.vmem %s2, 64
  %89 = vst [vmem:[%s88] sm:$0xff] %v86

// kernel: random_variable_conv2d.1
$region0: #{random_variable_conv2d.1}
  #allocation0 [shape = 'u32[]', space=smem, size = 0x4, offset = 0x4, fixed_abs, tag = 'smem constant byte address 0x4 - core index']
  #allocation1 [shape = 'u32[144,128]{1,0:T(1,128)}', space=vmem, size = 0x12000, scoped, tag = 'internal scratch']
  %s0 = inlined_call_operand.vmem [shape: f32[8,896], index: 0, kind: input, shape index: {}, may-alias: {0,1}]
  %s1 = inlined_call_operand.vmem [shape: f32[8,896], index: 1, kind: input, shape index: {}, may-alias: {0,1}]
  %s2 = inlined_call_operand.vmem [shape: f32[9,16,8], index: 2, kind: input, shape index: {}]
  %s3 = inlined_call_operand.vmem [shape: f32[16,1], index: 3, kind: input, shape index: {}]
  %s4 = inlined_call_operand.vmem [shape: f32[16,768], index: 4, kind: output, shape index: {}]
  %s5 = sld [smem:[#allocation0]]
  $region26: #{random_variable_conv2d.1} parent=0
    _
  %s7 = ssub.s32 1, %s5
  %s8 = scalar_select 0, %s7, %s5
  // Predicated region
  $region2: #{random_variable_conv2d.1} parent=0 // pred_check
    _
  $region3: #{random_variable_conv2d.1} parent=0 // pred_check_branch
    %10 = sbr.rel (0) target = $region5
  $region4: #{random_variable_conv2d.1} parent=0 // pred_region
    _
  $region5: #{random_variable_conv2d.1} parent=0 // pred_fallthru
    _
  // Predicated region
  $region6: #{random_variable_conv2d.1} parent=0 // pred_check
    _
  $region7: #{random_variable_conv2d.1} parent=0 // pred_check_branch
    %12 = sbr.rel (0) target = $region9
  $region8: #{random_variable_conv2d.1} parent=0 // pred_region
    %s13 = sadd.s32 0, 1
    %s14 = smul.u32 %s13, 6
    %p15 = scmp.lt.s32.totalorder %s14, 6
    %s16 = scalar_select %p15, %s14, 6
    %s17 = smul.addr %s16, 8
    %s18 = scalar_lea.vmem %s1, %s17
    %s19 = sadd.s32 0, 1
    %s20 = smul.u32 %s19, 6
  $region9: #{random_variable_conv2d.1} parent=0 // pred_fallthru
    _
  // Predicated region
  $region10: #{random_variable_conv2d.1} parent=0 // pred_check
    _
  $region11: #{random_variable_conv2d.1} parent=0 // pred_check_branch
    %22 = sbr.rel (0) target = $region13
  $region12: #{random_variable_conv2d.1} parent=0 // pred_region
    _
  $region13: #{random_variable_conv2d.1} parent=0 // pred_fallthru
    _
  // Predicated region
  $region14: #{random_variable_conv2d.1} parent=0 // pred_check
    _
  $region15: #{random_variable_conv2d.1} parent=0 // pred_check_branch
    %24 = sbr.rel (0) target = $region17
  $region16: #{random_variable_conv2d.1} parent=0 // pred_region
    _
  $region17: #{random_variable_conv2d.1} parent=0 // pred_fallthru
    _
  %s25 = sadd.s32 0, 1
  %s26 = smul.u32 %s25, 6
  %p27 = scmp.lt.s32.totalorder %s26, 6
  %s28 = scalar_select %p27, %s26, 6
  %s29 = smul.addr %s28, 8
  %s30 = scalar_lea.vmem %s1, %s29
  %s31 = sadd.s32 0, 1
  %s32 = smul.u32 %s31, 6
  %p33 = scmp.lt.s32.totalorder %s32, 6
  %s34 = scalar_select %p33, %s32, 6
  %s35 = smul.addr %s34, 8
  %s36 = scalar_lea.vmem %s1, %s35
  %s37 = sadd.s32 0, 1
  %s38 = smul.u32 %s37, 6
  %v39 = vld [vmem:[%s0] sm:$0xff]
  %v40 = vld [vmem:[%s0 + $0x8] sm:$0xff]
  %v41 = vld [vmem:[%s0 + $0x10] sm:$0xff]
  %v42 = vld [vmem:[%s0 + $0x18] sm:$0xff]
  %v43 = vld [vmem:[%s0 + $0x20] sm:$0xff]
  %v44 = vld [vmem:[%s0 + $0x28] sm:$0xff]
  %v45 = vld [vmem:[%s36] sm:$0xff]
  %v46 = vld [vmem:[%s2] sm:$0xff]
  %v47 = vld [vmem:[%s2 + $0x8] sm:$0xff]
  %s48 = scalar_lea.vmem %s2, 16
  %v49 = vld [vmem:[%s48] sm:$0xff]
  %v50 = vld [vmem:[%s48 + $0x8] sm:$0xff]
  %58 = vrot.lane.b32.xlu0 %v39, 127
  %v59 = vpop.permute.xlu0 %58
  %60 = vrot.lane.b32.xlu0 %v40, 127
  %v61 = vpop.permute.xlu0 %60
  %62 = vrot.lane.b32.xlu0 %v41, 127
  %v63 = vpop.permute.xlu0 %62
  %64 = vrot.lane.b32.xlu0 %v42, 127
  %v65 = vpop.permute.xlu0 %64
  %66 = vrot.lane.b32.xlu0 %v43, 127
  %v67 = vpop.permute.xlu0 %66
  %68 = vrot.lane.b32.xlu0 %v44, 127
  %v69 = vpop.permute.xlu0 %68
  %70 = vrot.lane.b32.xlu0 %v45, 127
  %v71 = vpop.permute.xlu0 %70
  %vm72 = vcmask 1039360
  %v73 = vsel %vm72, %v59, %v61
  %v74 = vsel %vm72, %v61, %v63
  %v75 = vsel %vm72, %v63, %v65
  %v76 = vsel %vm72, %v65, %v67
  %v77 = vsel %vm72, %v67, %v69
  %v78 = vsel %vm72, %v69, %v71
  %vm85 = vcmask 64512
  %v87 = vsel %vm85, %v49, 0
  %v90 = vsel %vm85, %v50, 0
  %92 = vmatprep.subr.mxu0 %v74
  %93 = vmatpush1.msra.mxu0 %v73
  %94 = vmatprep.subr.mxu0 0.0
  %95 = vmatpush1.msra.mxu0 0.0
  %96 = vmatprep.subr.mxu0 0.0
  %97 = vmatpush1.msra.mxu0 0.0
  %98 = vmatprep.subr.mxu0 0.0
  %99 = vmatpush1.msra.mxu0 0.0
  %100 = vmatprep.subr.mxu0 0.0
  %101 = vmatpush1.msra.mxu0 0.0
  %102 = vmatprep.subr.mxu0 0.0
  %103 = vmatpush1.msra.mxu0 0.0
  %104 = vmatprep.subr.mxu0 0.0
  %105 = vmatpush1.msra.mxu0 0.0
  %106 = vmatprep.subr.mxu0 0.0
  %107 = vmatpush1.msra.mxu0 0.0
  %108 = vmatprep.subr.mxu0 0.0
  %109 = vmatpush1.msra.mxu0 0.0
  %110 = vmatprep.subr.mxu0 0.0
  %111 = vmatpush1.msra.mxu0 0.0
  %112 = vmatprep.subr.mxu0 0.0
  %113 = vmatpush1.msra.mxu0 0.0
  %114 = vmatprep.subr.mxu0 0.0
  %115 = vmatpush1.msra.mxu0 0.0
  %116 = vmatprep.subr.mxu0 0.0
  %117 = vmatpush1.msra.mxu0 0.0
  %118 = vmatprep.subr.mxu0 0.0
  %119 = vmatpush1.msra.mxu0 0.0
  %120 = vmatprep.subr.mxu0 0.0
  %121 = vmatpush1.msra.mxu0 0.0
  %122 = vmatprep.subr.mxu0 0.0
  %123 = vmatpush1.msra.mxu0 0.0
  %124 = vmatprep.subr.mxu0 0.0
  %125 = vmatpush1.msra.mxu0 0.0
  %126 = vmatprep.subr.mxu0 0.0
  %127 = vmatpush1.msra.mxu0 0.0
  %128 = vmatprep.subr.mxu0 0.0
  %129 = vmatpush1.msra.mxu0 0.0
  %130 = vmatprep.subr.mxu0 0.0
  %131 = vmatpush1.msra.mxu0 0.0
  %132 = vmatprep.subr.mxu0 0.0
  %133 = vmatpush1.msra.mxu0 0.0
  %134 = vmatprep.subr.mxu0 0.0
  %135 = vmatpush1.msra.mxu0 0.0
  %136 = vmatprep.subr.mxu0 0.0
  %137 = vmatpush1.msra.mxu0 0.0
  %138 = vmatprep.subr.mxu0 0.0
  %139 = vmatpush1.msra.mxu0 0.0
  %140 = vmatprep.subr.mxu0 0.0
  %141 = vmatpush1.msra.mxu0 0.0
  %142 = vmatprep.subr.mxu0 0.0
  %143 = vmatpush1.msra.mxu0 0.0
  %144 = vmatprep.subr.mxu0 0.0
  %145 = vmatpush1.msra.mxu0 0.0
  %146 = vmatprep.subr.mxu0 0.0
  %147 = vmatpush1.msra.mxu0 0.0
  %148 = vmatprep.subr.mxu0 0.0
  %149 = vmatpush1.msra.mxu0 0.0
  %150 = vmatprep.subr.mxu0 0.0
  %151 = vmatpush1.msra.mxu0 0.0
  %152 = vmatprep.subr.mxu0 0.0
  %153 = vmatpush1.msra.mxu0 0.0
  %154 = vmatprep.subr.mxu0 0.0
  %155 = vmatpush1.msra.mxu0 0.0
  %156 = vmatprep.mubr.f32.mxu0 0.0
  %157 = vmatmul.mubr.f32.gmra.mrb[0].mxu0 %v87
  %v158 = vpop.f32.mrb[0].mxu0
  %v159 = vadd.f32 0.0, %v158
  %v160 = vpop.f32.mrb[0].mxu0
  %v161 = vadd.f32 0.0, %v160
  %162 = vmatprep.mubr.f32.mxu0 0.0
  %163 = vmatmul.mubr.f32.gmra.mrb[0].mxu0 %v90
  %v164 = vpop.f32.mrb[0].mxu0
  %v165 = vadd.f32 0.0, %v164
  %v166 = vpop.f32.mrb[0].mxu0
  %v167 = vadd.f32 0.0, %v166
  %168 = vdwg.mxu0
  %169 = vmatprep.subr.mxu0 %v76
  %170 = vmatpush1.msra.mxu0 %v75
  %171 = vmatprep.subr.mxu0 0.0
  %172 = vmatpush1.msra.mxu0 0.0
  %173 = vmatprep.subr.mxu0 0.0
  %174 = vmatpush1.msra.mxu0 0.0
  %175 = vmatprep.subr.mxu0 0.0
  %176 = vmatpush1.msra.mxu0 0.0
  %177 = vmatprep.subr.mxu0 0.0
  %178 = vmatpush1.msra.mxu0 0.0
  %179 = vmatprep.subr.mxu0 0.0
  %180 = vmatpush1.msra.mxu0 0.0
  %181 = vmatprep.subr.mxu0 0.0
  %182 = vmatpush1.msra.mxu0 0.0
  %183 = vmatprep.subr.mxu0 0.0
  %184 = vmatpush1.msra.mxu0 0.0
  %185 = vmatprep.subr.mxu0 0.0
  %186 = vmatpush1.msra.mxu0 0.0
  %187 = vmatprep.subr.mxu0 0.0
  %188 = vmatpush1.msra.mxu0 0.0
  %189 = vmatprep.subr.mxu0 0.0
  %190 = vmatpush1.msra.mxu0 0.0
  %191 = vmatprep.subr.mxu0 0.0
  %192 = vmatpush1.msra.mxu0 0.0
  %193 = vmatprep.subr.mxu0 0.0
  %194 = vmatpush1.msra.mxu0 0.0
  %195 = vmatprep.subr.mxu0 0.0
  %196 = vmatpush1.msra.mxu0 0.0
  %197 = vmatprep.subr.mxu0 0.0
  %198 = vmatpush1.msra.mxu0 0.0
  %199 = vmatprep.subr.mxu0 0.0
  %200 = vmatpush1.msra.mxu0 0.0
  %201 = vmatprep.subr.mxu0 0.0
  %202 = vmatpush1.msra.mxu0 0.0
  %203 = vmatprep.subr.mxu0 0.0
  %204 = vmatpush1.msra.mxu0 0.0
  %205 = vmatprep.subr.mxu0 0.0
  %206 = vmatpush1.msra.mxu0 0.0
  %207 = vmatprep.subr.mxu0 0.0
  %208 = vmatpush1.msra.mxu0 0.0
  %209 = vmatprep.subr.mxu0 0.0
  %210 = vmatpush1.msra.mxu0 0.0
  %211 = vmatprep.subr.mxu0 0.0
  %212 = vmatpush1.msra.mxu0 0.0
  %213 = vmatprep.subr.mxu0 0.0
  %214 = vmatpush1.msra.mxu0 0.0
  %215 = vmatprep.subr.mxu0 0.0
  %216 = vmatpush1.msra.mxu0 0.0
  %217 = vmatprep.subr.mxu0 0.0
  %218 = vmatpush1.msra.mxu0 0.0
  %219 = vmatprep.subr.mxu0 0.0
  %220 = vmatpush1.msra.mxu0 0.0
  %221 = vmatprep.subr.mxu0 0.0
  %222 = vmatpush1.msra.mxu0 0.0
  %223 = vmatprep.subr.mxu0 0.0
  %224 = vmatpush1.msra.mxu0 0.0
  %225 = vmatprep.subr.mxu0 0.0
  %226 = vmatpush1.msra.mxu0 0.0
  %227 = vmatprep.subr.mxu0 0.0
  %228 = vmatpush1.msra.mxu0 0.0
  %229 = vmatprep.subr.mxu0 0.0
  %230 = vmatpush1.msra.mxu0 0.0
  %231 = vmatprep.subr.mxu0 0.0
  %232 = vmatpush1.msra.mxu0 0.0
  %233 = vmatprep.mubr.f32.mxu0 0.0
  %234 = vmatmul.mubr.f32.gmra.mrb[0].mxu0 %v87
  %v235 = vpop.f32.mrb[0].mxu0
  %v236 = vadd.f32 0.0, %v235
  %v237 = vpop.f32.mrb[0].mxu0
  %v238 = vadd.f32 0.0, %v237
  %239 = vmatprep.mubr.f32.mxu0 0.0
  %240 = vmatmul.mubr.f32.gmra.mrb[0].mxu0 %v90
  %v241 = vpop.f32.mrb[0].mxu0
  %v242 = vadd.f32 0.0, %v241
  %v243 = vpop.f32.mrb[0].mxu0
  %v244 = vadd.f32 0.0, %v243
  %245 = vdwg.mxu0
  %246 = vmatprep.subr.mxu0 %v78
  %247 = vmatpush1.msra.mxu0 %v77
  %248 = vmatprep.subr.mxu0 0.0
  %249 = vmatpush1.msra.mxu0 0.0
  %250 = vmatprep.subr.mxu0 0.0
  %251 = vmatpush1.msra.mxu0 0.0
  %252 = vmatprep.subr.mxu0 0.0
  %253 = vmatpush1.msra.mxu0 0.0
  %254 = vmatprep.subr.mxu0 0.0
  %255 = vmatpush1.msra.mxu0 0.0
  %256 = vmatprep.subr.mxu0 0.0
  %257 = vmatpush1.msra.mxu0 0.0
  %258 = vmatprep.subr.mxu0 0.0
  %259 = vmatpush1.msra.mxu0 0.0
  %260 = vmatprep.subr.mxu0 0.0
  %261 = vmatpush1.msra.mxu0 0.0
  %262 = vmatprep.subr.mxu0 0.0
  %263 = vmatpush1.msra.mxu0 0.0
  %264 = vmatprep.subr.mxu0 0.0
  %265 = vmatpush1.msra.mxu0 0.0
  %266 = vmatprep.subr.mxu0 0.0
  %267 = vmatpush1.msra.mxu0 0.0
  %268 = vmatprep.subr.mxu0 0.0
  %269 = vmatpush1.msra.mxu0 0.0
  %270 = vmatprep.subr.mxu0 0.0
  %271 = vmatpush1.msra.mxu0 0.0
  %272 = vmatprep.subr.mxu0 0.0
  %273 = vmatpush1.msra.mxu0 0.0
  %274 = vmatprep.subr.mxu0 0.0
  %275 = vmatpush1.msra.mxu0 0.0
  %276 = vmatprep.subr.mxu0 0.0
  %277 = vmatpush1.msra.mxu0 0.0
  %278 = vmatprep.subr.mxu0 0.0
  %279 = vmatpush1.msra.mxu0 0.0
  %280 = vmatprep.subr.mxu0 0.0
  %281 = vmatpush1.msra.mxu0 0.0
  %282 = vmatprep.subr.mxu0 0.0
  %283 = vmatpush1.msra.mxu0 0.0
  %284 = vmatprep.subr.mxu0 0.0
  %285 = vmatpush1.msra.mxu0 0.0
  %286 = vmatprep.subr.mxu0 0.0
  %287 = vmatpush1.msra.mxu0 0.0
  %288 = vmatprep.subr.mxu0 0.0
  %289 = vmatpush1.msra.mxu0 0.0
  %290 = vmatprep.subr.mxu0 0.0
  %291 = vmatpush1.msra.mxu0 0.0
  %292 = vmatprep.subr.mxu0 0.0
  %293 = vmatpush1.msra.mxu0 0.0
  %294 = vmatprep.subr.mxu0 0.0
  %295 = vmatpush1.msra.mxu0 0.0
  %296 = vmatprep.subr.mxu0 0.0
  %297 = vmatpush1.msra.mxu0 0.0
  %298 = vmatprep.subr.mxu0 0.0
  %299 = vmatpush1.msra.mxu0 0.0
  %300 = vmatprep.subr.mxu0 0.0
  %301 = vmatpush1.msra.mxu0 0.0
  %302 = vmatprep.subr.mxu0 0.0
  %303 = vmatpush1.msra.mxu0 0.0
  %304 = vmatprep.subr.mxu0 0.0
  %305 = vmatpush1.msra.mxu0 0.0
  %306 = vmatprep.subr.mxu0 0.0
  %307 = vmatpush1.msra.mxu0 0.0
  %308 = vmatprep.subr.mxu0 0.0
  %309 = vmatpush1.msra.mxu0 0.0
  %310 = vmatprep.mubr.f32.mxu0 0.0
  %311 = vmatmul.mubr.f32.gmra.mrb[0].mxu0 %v87
  %v312 = vpop.f32.mrb[0].mxu0
  %v313 = vadd.f32 0.0, %v312
  %v314 = vpop.f32.mrb[0].mxu0
  %v315 = vadd.f32 0.0, %v314
  %316 = vmatprep.mubr.f32.mxu0 0.0
  %317 = vmatmul.mubr.f32.gmra.mrb[0].mxu0 %v90
  %v318 = vpop.f32.mrb[0].mxu0
  %v319 = vadd.f32 0.0, %v318
  %v320 = vpop.f32.mrb[0].mxu0
  %v321 = vadd.f32 0.0, %v320
  %322 = vdwg.mxu0
  %v324 = vsel %vm85, %v46, 0
  %v327 = vsel %vm85, %v47, 0
  %329 = vmatprep.subr.mxu0 %v40
  %330 = vmatpush1.msra.mxu0 %v39
  %331 = vmatprep.subr.mxu0 0.0
  %332 = vmatpush1.msra.mxu0 0.0
  %333 = vmatprep.subr.mxu0 0.0
  %334 = vmatpush1.msra.mxu0 0.0
  %335 = vmatprep.subr.mxu0 0.0
  %336 = vmatpush1.msra.mxu0 0.0
  %337 = vmatprep.subr.mxu0 0.0
  %338 = vmatpush1.msra.mxu0 0.0
  %339 = vmatprep.subr.mxu0 0.0
  %340 = vmatpush1.msra.mxu0 0.0
  %341 = vmatprep.subr.mxu0 0.0
  %342 = vmatpush1.msra.mxu0 0.0
  %343 = vmatprep.subr.mxu0 0.0
  %344 = vmatpush1.msra.mxu0 0.0
  %345 = vmatprep.subr.mxu0 0.0
  %346 = vmatpush1.msra.mxu0 0.0
  %347 = vmatprep.subr.mxu0 0.0
  %348 = vmatpush1.msra.mxu0 0.0
  %349 = vmatprep.subr.mxu0 0.0
  %350 = vmatpush1.msra.mxu0 0.0
  %351 = vmatprep.subr.mxu0 0.0
  %352 = vmatpush1.msra.mxu0 0.0
  %353 = vmatprep.subr.mxu0 0.0
  %354 = vmatpush1.msra.mxu0 0.0
  %355 = vmatprep.subr.mxu0 0.0
  %356 = vmatpush1.msra.mxu0 0.0
  %357 = vmatprep.subr.mxu0 0.0
  %358 = vmatpush1.msra.mxu0 0.0
  %359 = vmatprep.subr.mxu0 0.0
  %360 = vmatpush1.msra.mxu0 0.0
  %361 = vmatprep.subr.mxu0 0.0
  %362 = vmatpush1.msra.mxu0 0.0
  %363 = vmatprep.subr.mxu0 0.0
  %364 = vmatpush1.msra.mxu0 0.0
  %365 = vmatprep.subr.mxu0 0.0
  %366 = vmatpush1.msra.mxu0 0.0
  %367 = vmatprep.subr.mxu0 0.0
  %368 = vmatpush1.msra.mxu0 0.0
  %369 = vmatprep.subr.mxu0 0.0
  %370 = vmatpush1.msra.mxu0 0.0
  %371 = vmatprep.subr.mxu0 0.0
  %372 = vmatpush1.msra.mxu0 0.0
  %373 = vmatprep.subr.mxu0 0.0
  %374 = vmatpush1.msra.mxu0 0.0
  %375 = vmatprep.subr.mxu0 0.0
  %376 = vmatpush1.msra.mxu0 0.0
  %377 = vmatprep.subr.mxu0 0.0
  %378 = vmatpush1.msra.mxu0 0.0
  %379 = vmatprep.subr.mxu0 0.0
  %380 = vmatpush1.msra.mxu0 0.0
  %381 = vmatprep.subr.mxu0 0.0
  %382 = vmatpush1.msra.mxu0 0.0
  %383 = vmatprep.subr.mxu0 0.0
  %384 = vmatpush1.msra.mxu0 0.0
  %385 = vmatprep.subr.mxu0 0.0
  %386 = vmatpush1.msra.mxu0 0.0
  %387 = vmatprep.subr.mxu0 0.0
  %388 = vmatpush1.msra.mxu0 0.0
  %389 = vmatprep.subr.mxu0 0.0
  %390 = vmatpush1.msra.mxu0 0.0
  %391 = vmatprep.subr.mxu0 0.0
  %392 = vmatpush1.msra.mxu0 0.0
  %393 = vmatprep.mubr.f32.mxu0 0.0
  %394 = vmatmul.mubr.f32.gmra.mrb[0].mxu0 %v324
  %v395 = vpop.f32.mrb[0].mxu0
  %v396 = vadd.f32 %v159, %v395
  %v397 = vpop.f32.mrb[0].mxu0
  %v398 = vadd.f32 %v161, %v397
  %399 = vmatprep.mubr.f32.mxu0 0.0
  %400 = vmatmul.mubr.f32.gmra.mrb[0].mxu0 %v327
  %v401 = vpop.f32.mrb[0].mxu0
  %v402 = vadd.f32 %v165, %v401
  %v403 = vpop.f32.mrb[0].mxu0
  %v404 = vadd.f32 %v167, %v403
  %405 = vdwg.mxu0
  %406 = vmatprep.subr.mxu0 %v42
  %407 = vmatpush1.msra.mxu0 %v41
  %408 = vmatprep.subr.mxu0 0.0
  %409 = vmatpush1.msra.mxu0 0.0
  %410 = vmatprep.subr.mxu0 0.0
  %411 = vmatpush1.msra.mxu0 0.0
  %412 = vmatprep.subr.mxu0 0.0
  %413 = vmatpush1.msra.mxu0 0.0
  %414 = vmatprep.subr.mxu0 0.0
  %415 = vmatpush1.msra.mxu0 0.0
  %416 = vmatprep.subr.mxu0 0.0
  %417 = vmatpush1.msra.mxu0 0.0
  %418 = vmatprep.subr.mxu0 0.0
  %419 = vmatpush1.msra.mxu0 0.0
  %420 = vmatprep.subr.mxu0 0.0
  %421 = vmatpush1.msra.mxu0 0.0
  %422 = vmatprep.subr.mxu0 0.0
  %423 = vmatpush1.msra.mxu0 0.0
  %424 = vmatprep.subr.mxu0 0.0
  %425 = vmatpush1.msra.mxu0 0.0
  %426 = vmatprep.subr.mxu0 0.0
  %427 = vmatpush1.msra.mxu0 0.0
  %428 = vmatprep.subr.mxu0 0.0
  %429 = vmatpush1.msra.mxu0 0.0
  %430 = vmatprep.subr.mxu0 0.0
  %431 = vmatpush1.msra.mxu0 0.0
  %432 = vmatprep.subr.mxu0 0.0
  %433 = vmatpush1.msra.mxu0 0.0
  %434 = vmatprep.subr.mxu0 0.0
  %435 = vmatpush1.msra.mxu0 0.0
  %436 = vmatprep.subr.mxu0 0.0
  %437 = vmatpush1.msra.mxu0 0.0
  %438 = vmatprep.subr.mxu0 0.0
  %439 = vmatpush1.msra.mxu0 0.0
  %440 = vmatprep.subr.mxu0 0.0
  %441 = vmatpush1.msra.mxu0 0.0
  %442 = vmatprep.subr.mxu0 0.0
  %443 = vmatpush1.msra.mxu0 0.0
  %444 = vmatprep.subr.mxu0 0.0
  %445 = vmatpush1.msra.mxu0 0.0
  %446 = vmatprep.subr.mxu0 0.0
  %447 = vmatpush1.msra.mxu0 0.0
  %448 = vmatprep.subr.mxu0 0.0
  %449 = vmatpush1.msra.mxu0 0.0
  %450 = vmatprep.subr.mxu0 0.0
  %451 = vmatpush1.msra.mxu0 0.0
  %452 = vmatprep.subr.mxu0 0.0
  %453 = vmatpush1.msra.mxu0 0.0
  %454 = vmatprep.subr.mxu0 0.0
  %455 = vmatpush1.msra.mxu0 0.0
  %456 = vmatprep.subr.mxu0 0.0
  %457 = vmatpush1.msra.mxu0 0.0
  %458 = vmatprep.subr.mxu0 0.0
  %459 = vmatpush1.msra.mxu0 0.0
  %460 = vmatprep.subr.mxu0 0.0
  %461 = vmatpush1.msra.mxu0 0.0
  %462 = vmatprep.subr.mxu0 0.0
  %463 = vmatpush1.msra.mxu0 0.0
  %464 = vmatprep.subr.mxu0 0.0
  %465 = vmatpush1.msra.mxu0 0.0
  %466 = vmatprep.subr.mxu0 0.0
  %467 = vmatpush1.msra.mxu0 0.0
  %468 = vmatprep.subr.mxu0 0.0
  %469 = vmatpush1.msra.mxu0 0.0
  %470 = vmatprep.mubr.f32.mxu0 0.0
  %471 = vmatmul.mubr.f32.gmra.mrb[0].mxu0 %v324
  %v472 = vpop.f32.mrb[0].mxu0
  %v473 = vadd.f32 %v236, %v472
  %v474 = vpop.f32.mrb[0].mxu0
  %v475 = vadd.f32 %v238, %v474
  %476 = vmatprep.mubr.f32.mxu0 0.0
  %477 = vmatmul.mubr.f32.gmra.mrb[0].mxu0 %v327
  %v478 = vpop.f32.mrb[0].mxu0
  %v479 = vadd.f32 %v242, %v478
  %v480 = vpop.f32.mrb[0].mxu0
  %v481 = vadd.f32 %v244, %v480
  %482 = vdwg.mxu0
  %483 = vmatprep.subr.mxu0 %v44
  %484 = vmatpush1.msra.mxu0 %v43
  %485 = vmatprep.subr.mxu0 0.0
  %486 = vmatpush1.msra.mxu0 0.0
  %487 = vmatprep.subr.mxu0 0.0
  %488 = vmatpush1.msra.mxu0 0.0
  %489 = vmatprep.subr.mxu0 0.0
  %490 = vmatpush1.msra.mxu0 0.0
  %491 = vmatprep.subr.mxu0 0.0
  %492 = vmatpush1.msra.mxu0 0.0
  %493 = vmatprep.subr.mxu0 0.0
  %494 = vmatpush1.msra.mxu0 0.0
  %495 = vmatprep.subr.mxu0 0.0
  %496 = vmatpush1.msra.mxu0 0.0
  %497 = vmatprep.subr.mxu0 0.0
  %498 = vmatpush1.msra.mxu0 0.0
  %499 = vmatprep.subr.mxu0 0.0
  %500 = vmatpush1.msra.mxu0 0.0
  %501 = vmatprep.subr.mxu0 0.0
  %502 = vmatpush1.msra.mxu0 0.0
  %503 = vmatprep.subr.mxu0 0.0
  %504 = vmatpush1.msra.mxu0 0.0
  %505 = vmatprep.subr.mxu0 0.0
  %506 = vmatpush1.msra.mxu0 0.0
  %507 = vmatprep.subr.mxu0 0.0
  %508 = vmatpush1.msra.mxu0 0.0
  %509 = vmatprep.subr.mxu0 0.0
  %510 = vmatpush1.msra.mxu0 0.0
  %511 = vmatprep.subr.mxu0 0.0
  %512 = vmatpush1.msra.mxu0 0.0
  %513 = vmatprep.subr.mxu0 0.0
  %514 = vmatpush1.msra.mxu0 0.0
  %515 = vmatprep.subr.mxu0 0.0
  %516 = vmatpush1.msra.mxu0 0.0
  %517 = vmatprep.subr.mxu0 0.0
  %518 = vmatpush1.msra.mxu0 0.0
  %519 = vmatprep.subr.mxu0 0.0
  %520 = vmatpush1.msra.mxu0 0.0
  %521 = vmatprep.subr.mxu0 0.0
  %522 = vmatpush1.msra.mxu0 0.0
  %523 = vmatprep.subr.mxu0 0.0
  %524 = vmatpush1.msra.mxu0 0.0
  %525 = vmatprep.subr.mxu0 0.0
  %526 = vmatpush1.msra.mxu0 0.0
  %527 = vmatprep.subr.mxu0 0.0
  %528 = vmatpush1.msra.mxu0 0.0
  %529 = vmatprep.subr.mxu0 0.0
  %530 = vmatpush1.msra.mxu0 0.0
  %531 = vmatprep.subr.mxu0 0.0
  %532 = vmatpush1.msra.mxu0 0.0
  %533 = vmatprep.subr.mxu0 0.0
  %534 = vmatpush1.msra.mxu0 0.0
  %535 = vmatprep.subr.mxu0 0.0
  %536 = vmatpush1.msra.mxu0 0.0
  %537 = vmatprep.subr.mxu0 0.0
  %538 = vmatpush1.msra.mxu0 0.0
  %539 = vmatprep.subr.mxu0 0.0
  %540 = vmatpush1.msra.mxu0 0.0
  %541 = vmatprep.subr.mxu0 0.0
  %542 = vmatpush1.msra.mxu0 0.0
  %543 = vmatprep.subr.mxu0 0.0
  %544 = vmatpush1.msra.mxu0 0.0
  %545 = vmatprep.subr.mxu0 0.0
  %546 = vmatpush1.msra.mxu0 0.0
  %547 = vmatprep.mubr.f32.mxu0 0.0
  %548 = vmatmul.mubr.f32.gmra.mrb[0].mxu0 %v324
  %v549 = vpop.f32.mrb[0].mxu0
  %v550 = vadd.f32 %v313, %v549
  %v551 = vpop.f32.mrb[0].mxu0
  %v552 = vadd.f32 %v315, %v551
  %553 = vmatprep.mubr.f32.mxu0 0.0
  %554 = vmatmul.mubr.f32.gmra.mrb[0].mxu0 %v327
  %v555 = vpop.f32.mrb[0].mxu0
  %v556 = vadd.f32 %v319, %v555
  %v557 = vpop.f32.mrb[0].mxu0
  %v558 = vadd.f32 %v321, %v557
  %559 = vdwg.mxu0
  %s560 = scalar_lea.vmem %s2, 32
  %v561 = vld [vmem:[%s560] sm:$0xff]
  %v562 = vld [vmem:[%s560 + $0x8] sm:$0xff]
  %563 = vrot.lane.b32.xlu0 %v39, 126
  %v564 = vpop.permute.xlu0 %563
  %565 = vrot.lane.b32.xlu0 %v40, 126
  %v566 = vpop.permute.xlu0 %565
  %567 = vrot.lane.b32.xlu0 %v41, 126
  %v568 = vpop.permute.xlu0 %567
  %569 = vrot.lane.b32.xlu0 %v42, 126
  %v570 = vpop.permute.xlu0 %569
  %571 = vrot.lane.b32.xlu0 %v43, 126
  %v572 = vpop.permute.xlu0 %571
  %573 = vrot.lane.b32.xlu0 %v44, 126
  %v574 = vpop.permute.xlu0 %573
  %575 = vrot.lane.b32.xlu0 %v45, 126
  %v576 = vpop.permute.xlu0 %575
  %vm577 = vcmask 1031168
  %v578 = vsel %vm577, %v564, %v566
  %v579 = vsel %vm577, %v566, %v568
  %v580 = vsel %vm577, %v568, %v570
  %v581 = vsel %vm577, %v570, %v572
  %v582 = vsel %vm577, %v572, %v574
  %v583 = vsel %vm577, %v574, %v576
  %v591 = vsel %vm85, %v561, 0
  %v594 = vsel %vm85, %v562, 0
  %596 = vmatprep.subr.mxu0 %v579
  %597 = vmatpush1.msra.mxu0 %v578
  %598 = vmatprep.subr.mxu0 0.0
  %599 = vmatpush1.msra.mxu0 0.0
  %600 = vmatprep.subr.mxu0 0.0
  %601 = vmatpush1.msra.mxu0 0.0
  %602 = vmatprep.subr.mxu0 0.0
  %603 = vmatpush1.msra.mxu0 0.0
  %604 = vmatprep.subr.mxu0 0.0
  %605 = vmatpush1.msra.mxu0 0.0
  %606 = vmatprep.subr.mxu0 0.0
  %607 = vmatpush1.msra.mxu0 0.0
  %608 = vmatprep.subr.mxu0 0.0
  %609 = vmatpush1.msra.mxu0 0.0
  %610 = vmatprep.subr.mxu0 0.0
  %611 = vmatpush1.msra.mxu0 0.0
  %612 = vmatprep.subr.mxu0 0.0
  %613 = vmatpush1.msra.mxu0 0.0
  %614 = vmatprep.subr.mxu0 0.0
  %615 = vmatpush1.msra.mxu0 0.0
  %616 = vmatprep.subr.mxu0 0.0
  %617 = vmatpush1.msra.mxu0 0.0
  %618 = vmatprep.subr.mxu0 0.0
  %619 = vmatpush1.msra.mxu0 0.0
  %620 = vmatprep.subr.mxu0 0.0
  %621 = vmatpush1.msra.mxu0 0.0
  %622 = vmatprep.subr.mxu0 0.0
  %623 = vmatpush1.msra.mxu0 0.0
  %624 = vmatprep.subr.mxu0 0.0
  %625 = vmatpush1.msra.mxu0 0.0
  %626 = vmatprep.subr.mxu0 0.0
  %627 = vmatpush1.msra.mxu0 0.0
  %628 = vmatprep.subr.mxu0 0.0
  %629 = vmatpush1.msra.mxu0 0.0
  %630 = vmatprep.subr.mxu0 0.0
  %631 = vmatpush1.msra.mxu0 0.0
  %632 = vmatprep.subr.mxu0 0.0
  %633 = vmatpush1.msra.mxu0 0.0
  %634 = vmatprep.subr.mxu0 0.0
  %635 = vmatpush1.msra.mxu0 0.0
  %636 = vmatprep.subr.mxu0 0.0
  %637 = vmatpush1.msra.mxu0 0.0
  %638 = vmatprep.subr.mxu0 0.0
  %639 = vmatpush1.msra.mxu0 0.0
  %640 = vmatprep.subr.mxu0 0.0
  %641 = vmatpush1.msra.mxu0 0.0
  %642 = vmatprep.subr.mxu0 0.0
  %643 = vmatpush1.msra.mxu0 0.0
  %644 = vmatprep.subr.mxu0 0.0
  %645 = vmatpush1.msra.mxu0 0.0
  %646 = vmatprep.subr.mxu0 0.0
  %647 = vmatpush1.msra.mxu0 0.0
  %648 = vmatprep.subr.mxu0 0.0
  %649 = vmatpush1.msra.mxu0 0.0
  %650 = vmatprep.subr.mxu0 0.0
  %651 = vmatpush1.msra.mxu0 0.0
  %652 = vmatprep.subr.mxu0 0.0
  %653 = vmatpush1.msra.mxu0 0.0
  %654 = vmatprep.subr.mxu0 0.0
  %655 = vmatpush1.msra.mxu0 0.0
  %656 = vmatprep.subr.mxu0 0.0
  %657 = vmatpush1.msra.mxu0 0.0
  %658 = vmatprep.subr.mxu0 0.0
  %659 = vmatpush1.msra.mxu0 0.0
  %660 = vmatprep.mubr.f32.mxu0 0.0
  %661 = vmatmul.mubr.f32.gmra.mrb[0].mxu0 %v591
  %v662 = vpop.f32.mrb[0].mxu0
  %v663 = vadd.f32 0.0, %v662
  %v664 = vpop.f32.mrb[0].mxu0
  %v665 = vadd.f32 0.0, %v664
  %666 = vmatprep.mubr.f32.mxu0 0.0
  %667 = vmatmul.mubr.f32.gmra.mrb[0].mxu0 %v594
  %v668 = vpop.f32.mrb[0].mxu0
  %v669 = vadd.f32 0.0, %v668
  %v670 = vpop.f32.mrb[0].mxu0
  %v671 = vadd.f32 0.0, %v670
  %672 = vdwg.mxu0
  %673 = vmatprep.subr.mxu0 %v581
  %674 = vmatpush1.msra.mxu0 %v580
  %675 = vmatprep.subr.mxu0 0.0
  %676 = vmatpush1.msra.mxu0 0.0
  %677 = vmatprep.subr.mxu0 0.0
  %678 = vmatpush1.msra.mxu0 0.0
  %679 = vmatprep.subr.mxu0 0.0
  %680 = vmatpush1.msra.mxu0 0.0
  %681 = vmatprep.subr.mxu0 0.0
  %682 = vmatpush1.msra.mxu0 0.0
  %683 = vmatprep.subr.mxu0 0.0
  %684 = vmatpush1.msra.mxu0 0.0
  %685 = vmatprep.subr.mxu0 0.0
  %686 = vmatpush1.msra.mxu0 0.0
  %687 = vmatprep.subr.mxu0 0.0
  %688 = vmatpush1.msra.mxu0 0.0
  %689 = vmatprep.subr.mxu0 0.0
  %690 = vmatpush1.msra.mxu0 0.0
  %691 = vmatprep.subr.mxu0 0.0
  %692 = vmatpush1.msra.mxu0 0.0
  %693 = vmatprep.subr.mxu0 0.0
  %694 = vmatpush1.msra.mxu0 0.0
  %695 = vmatprep.subr.mxu0 0.0
  %696 = vmatpush1.msra.mxu0 0.0
  %697 = vmatprep.subr.mxu0 0.0
  %698 = vmatpush1.msra.mxu0 0.0
  %699 = vmatprep.subr.mxu0 0.0
  %700 = vmatpush1.msra.mxu0 0.0
  %701 = vmatprep.subr.mxu0 0.0
  %702 = vmatpush1.msra.mxu0 0.0
  %703 = vmatprep.subr.mxu0 0.0
  %704 = vmatpush1.msra.mxu0 0.0
  %705 = vmatprep.subr.mxu0 0.0
  %706 = vmatpush1.msra.mxu0 0.0
  %707 = vmatprep.subr.mxu0 0.0
  %708 = vmatpush1.msra.mxu0 0.0
  %709 = vmatprep.subr.mxu0 0.0
  %710 = vmatpush1.msra.mxu0 0.0
  %711 = vmatprep.subr.mxu0 0.0
  %712 = vmatpush1.msra.mxu0 0.0
  %713 = vmatprep.subr.mxu0 0.0
  %714 = vmatpush1.msra.mxu0 0.0
  %715 = vmatprep.subr.mxu0 0.0
  %716 = vmatpush1.msra.mxu0 0.0
  %717 = vmatprep.subr.mxu0 0.0
  %718 = vmatpush1.msra.mxu0 0.0
  %719 = vmatprep.subr.mxu0 0.0
  %720 = vmatpush1.msra.mxu0 0.0
  %721 = vmatprep.subr.mxu0 0.0
  %722 = vmatpush1.msra.mxu0 0.0
  %723 = vmatprep.subr.mxu0 0.0
  %724 = vmatpush1.msra.mxu0 0.0
  %725 = vmatprep.subr.mxu0 0.0
  %726 = vmatpush1.msra.mxu0 0.0
  %727 = vmatprep.subr.mxu0 0.0
  %728 = vmatpush1.msra.mxu0 0.0
  %729 = vmatprep.subr.mxu0 0.0
  %730 = vmatpush1.msra.mxu0 0.0
  %731 = vmatprep.subr.mxu0 0.0
  %732 = vmatpush1.msra.mxu0 0.0
  %733 = vmatprep.subr.mxu0 0.0
  %734 = vmatpush1.msra.mxu0 0.0
  %735 = vmatprep.subr.mxu0 0.0
  %736 = vmatpush1.msra.mxu0 0.0
  %737 = vmatprep.mubr.f32.mxu0 0.0
  %738 = vmatmul.mubr.f32.gmra.mrb[0].mxu0 %v591
  %v739 = vpop.f32.mrb[0].mxu0
  %v740 = vadd.f32 0.0, %v739
  %v741 = vpop.f32.mrb[0].mxu0
  %v742 = vadd.f32 0.0, %v741
  %743 = vmatprep.mubr.f32.mxu0 0.0
  %744 = vmatmul.mubr.f32.gmra.mrb[0].mxu0 %v594
  %v745 = vpop.f32.mrb[0].mxu0
  %v746 = vadd.f32 0.0, %v745
  %v747 = vpop.f32.mrb[0].mxu0
  %v748 = vadd.f32 0.0, %v747
  %749 = vdwg.mxu0
  %750 = vmatprep.subr.mxu0 %v583
  %751 = vmatpush1.msra.mxu0 %v582
  %752 = vmatprep.subr.mxu0 0.0
  %753 = vmatpush1.msra.mxu0 0.0
  %754 = vmatprep.subr.mxu0 0.0
  %755 = vmatpush1.msra.mxu0 0.0
  %756 = vmatprep.subr.mxu0 0.0
  %757 = vmatpush1.msra.mxu0 0.0
  %758 = vmatprep.subr.mxu0 0.0
  %759 = vmatpush1.msra.mxu0 0.0
  %760 = vmatprep.subr.mxu0 0.0
  %761 = vmatpush1.msra.mxu0 0.0
  %762 = vmatprep.subr.mxu0 0.0
  %763 = vmatpush1.msra.mxu0 0.0
  %764 = vmatprep.subr.mxu0 0.0
  %765 = vmatpush1.msra.mxu0 0.0
  %766 = vmatprep.subr.mxu0 0.0
  %767 = vmatpush1.msra.mxu0 0.0
  %768 = vmatprep.subr.mxu0 0.0
  %769 = vmatpush1.msra.mxu0 0.0
  %770 = vmatprep.subr.mxu0 0.0
  %771 = vmatpush1.msra.mxu0 0.0
  %772 = vmatprep.subr.mxu0 0.0
  %773 = vmatpush1.msra.mxu0 0.0
  %774 = vmatprep.subr.mxu0 0.0
  %775 = vmatpush1.msra.mxu0 0.0
  %776 = vmatprep.subr.mxu0 0.0
  %777 = vmatpush1.msra.mxu0 0.0
  %778 = vmatprep.subr.mxu0 0.0
  %779 = vmatpush1.msra.mxu0 0.0
  %780 = vmatprep.subr.mxu0 0.0
  %781 = vmatpush1.msra.mxu0 0.0
  %782 = vmatprep.subr.mxu0 0.0
  %783 = vmatpush1.msra.mxu0 0.0
  %784 = vmatprep.subr.mxu0 0.0
  %785 = vmatpush1.msra.mxu0 0.0
  %786 = vmatprep.subr.mxu0 0.0
  %787 = vmatpush1.msra.mxu0 0.0
  %788 = vmatprep.subr.mxu0 0.0
  %789 = vmatpush1.msra.mxu0 0.0
  %790 = vmatprep.subr.mxu0 0.0
  %791 = vmatpush1.msra.mxu0 0.0
  %792 = vmatprep.subr.mxu0 0.0
  %793 = vmatpush1.msra.mxu0 0.0
  %794 = vmatprep.subr.mxu0 0.0
  %795 = vmatpush1.msra.mxu0 0.0
  %796 = vmatprep.subr.mxu0 0.0
  %797 = vmatpush1.msra.mxu0 0.0
  %798 = vmatprep.subr.mxu0 0.0
  %799 = vmatpush1.msra.mxu0 0.0
  %800 = vmatprep.subr.mxu0 0.0
  %801 = vmatpush1.msra.mxu0 0.0
  %802 = vmatprep.subr.mxu0 0.0
  %803 = vmatpush1.msra.mxu0 0.0
  %804 = vmatprep.subr.mxu0 0.0
  %805 = vmatpush1.msra.mxu0 0.0
  %806 = vmatprep.subr.mxu0 0.0
  %807 = vmatpush1.msra.mxu0 0.0
  %808 = vmatprep.subr.mxu0 0.0
  %809 = vmatpush1.msra.mxu0 0.0
  %810 = vmatprep.subr.mxu0 0.0
  %811 = vmatpush1.msra.mxu0 0.0
  %812 = vmatprep.subr.mxu0 0.0
  %813 = vmatpush1.msra.mxu0 0.0
  %814 = vmatprep.mubr.f32.mxu0 0.0
  %815 = vmatmul.mubr.f32.gmra.mrb[0].mxu0 %v591
  %v816 = vpop.f32.mrb[0].mxu0
  %v817 = vadd.f32 0.0, %v816
  %v818 = vpop.f32.mrb[0].mxu0
  %v819 = vadd.f32 0.0, %v818
  %820 = vmatprep.mubr.f32.mxu0 0.0
  %821 = vmatmul.mubr.f32.gmra.mrb[0].mxu0 %v594
  %v822 = vpop.f32.mrb[0].mxu0
  %v823 = vadd.f32 0.0, %v822
  %v824 = vpop.f32.mrb[0].mxu0
  %v825 = vadd.f32 0.0, %v824
  %826 = vdwg.mxu0
  %v827 = vadd.f32 %v396, %v663
  %v828 = vadd.f32 %v398, %v665
  %v829 = vadd.f32 %v473, %v740
  %v830 = vadd.f32 %v475, %v742
  %v831 = vadd.f32 %v550, %v817
  %v832 = vadd.f32 %v552, %v819
  %v833 = vadd.f32 %v402, %v669
  %v834 = vadd.f32 %v404, %v671
  %v835 = vadd.f32 %v479, %v746
  %v836 = vadd.f32 %v481, %v748
  %v837 = vadd.f32 %v556, %v823
  %v838 = vadd.f32 %v558, %v825
  %s839 = scalar_lea.vmem %s2, 48
  %v840 = vld [vmem:[%s839] sm:$0xff]
  %v841 = vld [vmem:[%s839 + $0x8] sm:$0xff]
  %842 = vrot.lane.b32.xlu0 %v39, 110
  %v843 = vpop.permute.xlu0 %842
  %844 = vrot.lane.b32.xlu0 %v40, 110
  %v845 = vpop.permute.xlu0 %844
  %846 = vrot.lane.b32.xlu0 %v41, 110
  %v847 = vpop.permute.xlu0 %846
  %848 = vrot.lane.b32.xlu0 %v42, 110
  %v849 = vpop.permute.xlu0 %848
  %850 = vrot.lane.b32.xlu0 %v43, 110
  %v851 = vpop.permute.xlu0 %850
  %852 = vrot.lane.b32.xlu0 %v44, 110
  %v853 = vpop.permute.xlu0 %852
  %854 = vrot.lane.b32.xlu0 %v45, 110
  %v855 = vpop.permute.xlu0 %854
  %vm856 = vcmask 900096
  %v857 = vsel %vm856, %v843, %v845
  %v858 = vsel %vm856, %v845, %v847
  %v859 = vsel %vm856, %v847, %v849
  %v860 = vsel %vm856, %v849, %v851
  %v861 = vsel %vm856, %v851, %v853
  %v862 = vsel %vm856, %v853, %v855
  %v870 = vsel %vm85, %v840, 0
  %v873 = vsel %vm85, %v841, 0
  %875 = vmatprep.subr.mxu0 %v858
  %876 = vmatpush1.msra.mxu0 %v857
  %877 = vmatprep.subr.mxu0 0.0
  %878 = vmatpush1.msra.mxu0 0.0
  %879 = vmatprep.subr.mxu0 0.0
  %880 = vmatpush1.msra.mxu0 0.0
  %881 = vmatprep.subr.mxu0 0.0
  %882 = vmatpush1.msra.mxu0 0.0
  %883 = vmatprep.subr.mxu0 0.0
  %884 = vmatpush1.msra.mxu0 0.0
  %885 = vmatprep.subr.mxu0 0.0
  %886 = vmatpush1.msra.mxu0 0.0
  %887 = vmatprep.subr.mxu0 0.0
  %888 = vmatpush1.msra.mxu0 0.0
  %889 = vmatprep.subr.mxu0 0.0
  %890 = vmatpush1.msra.mxu0 0.0
  %891 = vmatprep.subr.mxu0 0.0
  %892 = vmatpush1.msra.mxu0 0.0
  %893 = vmatprep.subr.mxu0 0.0
  %894 = vmatpush1.msra.mxu0 0.0
  %895 = vmatprep.subr.mxu0 0.0
  %896 = vmatpush1.msra.mxu0 0.0
  %897 = vmatprep.subr.mxu0 0.0
  %898 = vmatpush1.msra.mxu0 0.0
  %899 = vmatprep.subr.mxu0 0.0
  %900 = vmatpush1.msra.mxu0 0.0
  %901 = vmatprep.subr.mxu0 0.0
  %902 = vmatpush1.msra.mxu0 0.0
  %903 = vmatprep.subr.mxu0 0.0
  %904 = vmatpush1.msra.mxu0 0.0
  %905 = vmatprep.subr.mxu0 0.0
  %906 = vmatpush1.msra.mxu0 0.0
  %907 = vmatprep.subr.mxu0 0.0
  %908 = vmatpush1.msra.mxu0 0.0
  %909 = vmatprep.subr.mxu0 0.0
  %910 = vmatpush1.msra.mxu0 0.0
  %911 = vmatprep.subr.mxu0 0.0
  %912 = vmatpush1.msra.mxu0 0.0
  %913 = vmatprep.subr.mxu0 0.0
  %914 = vmatpush1.msra.mxu0 0.0
  %915 = vmatprep.subr.mxu0 0.0
  %916 = vmatpush1.msra.mxu0 0.0
  %917 = vmatprep.subr.mxu0 0.0
  %918 = vmatpush1.msra.mxu0 0.0
  %919 = vmatprep.subr.mxu0 0.0
  %920 = vmatpush1.msra.mxu0 0.0
  %921 = vmatprep.subr.mxu0 0.0
  %922 = vmatpush1.msra.mxu0 0.0
  %923 = vmatprep.subr.mxu0 0.0
  %924 = vmatpush1.msra.mxu0 0.0
  %925 = vmatprep.subr.mxu0 0.0
  %926 = vmatpush1.msra.mxu0 0.0
  %927 = vmatprep.subr.mxu0 0.0
  %928 = vmatpush1.msra.mxu0 0.0
  %929 = vmatprep.subr.mxu0 0.0
  %930 = vmatpush1.msra.mxu0 0.0
  %931 = vmatprep.subr.mxu0 0.0
  %932 = vmatpush1.msra.mxu0 0.0
  %933 = vmatprep.subr.mxu0 0.0
  %934 = vmatpush1.msra.mxu0 0.0
  %935 = vmatprep.subr.mxu0 0.0
  %936 = vmatpush1.msra.mxu0 0.0
  %937 = vmatprep.subr.mxu0 0.0
  %938 = vmatpush1.msra.mxu0 0.0
  %939 = vmatprep.mubr.f32.mxu0 0.0
  %940 = vmatmul.mubr.f32.gmra.mrb[0].mxu0 %v870
  %v941 = vpop.f32.mrb[0].mxu0
  %v942 = vadd.f32 0.0, %v941
  %v943 = vpop.f32.mrb[0].mxu0
  %v944 = vadd.f32 0.0, %v943
  %945 = vmatprep.mubr.f32.mxu0 0.0
  %946 = vmatmul.mubr.f32.gmra.mrb[0].mxu0 %v873
  %v947 = vpop.f32.mrb[0].mxu0
  %v948 = vadd.f32 0.0, %v947
  %v949 = vpop.f32.mrb[0].mxu0
  %v950 = vadd.f32 0.0, %v949
  %951 = vdwg.mxu0
  %952 = vmatprep.subr.mxu0 %v860
  %953 = vmatpush1.msra.mxu0 %v859
  %954 = vmatprep.subr.mxu0 0.0
  %955 = vmatpush1.msra.mxu0 0.0
  %956 = vmatprep.subr.mxu0 0.0
  %957 = vmatpush1.msra.mxu0 0.0
  %958 = vmatprep.subr.mxu0 0.0
  %959 = vmatpush1.msra.mxu0 0.0
  %960 = vmatprep.subr.mxu0 0.0
  %961 = vmatpush1.msra.mxu0 0.0
  %962 = vmatprep.subr.mxu0 0.0
  %963 = vmatpush1.msra.mxu0 0.0
  %964 = vmatprep.subr.mxu0 0.0
  %965 = vmatpush1.msra.mxu0 0.0
  %966 = vmatprep.subr.mxu0 0.0
  %967 = vmatpush1.msra.mxu0 0.0
  %968 = vmatprep.subr.mxu0 0.0
  %969 = vmatpush1.msra.mxu0 0.0
  %970 = vmatprep.subr.mxu0 0.0
  %971 = vmatpush1.msra.mxu0 0.0
  %972 = vmatprep.subr.mxu0 0.0
  %973 = vmatpush1.msra.mxu0 0.0
  %974 = vmatprep.subr.mxu0 0.0
  %975 = vmatpush1.msra.mxu0 0.0
  %976 = vmatprep.subr.mxu0 0.0
  %977 = vmatpush1.msra.mxu0 0.0
  %978 = vmatprep.subr.mxu0 0.0
  %979 = vmatpush1.msra.mxu0 0.0
  %980 = vmatprep.subr.mxu0 0.0
  %981 = vmatpush1.msra.mxu0 0.0
  %982 = vmatprep.subr.mxu0 0.0
  %983 = vmatpush1.msra.mxu0 0.0
  %984 = vmatprep.subr.mxu0 0.0
  %985 = vmatpush1.msra.mxu0 0.0
  %986 = vmatprep.subr.mxu0 0.0
  %987 = vmatpush1.msra.mxu0 0.0
  %988 = vmatprep.subr.mxu0 0.0
  %989 = vmatpush1.msra.mxu0 0.0
  %990 = vmatprep.subr.mxu0 0.0
  %991 = vmatpush1.msra.mxu0 0.0
  %992 = vmatprep.subr.mxu0 0.0
  %993 = vmatpush1.msra.mxu0 0.0
  %994 = vmatprep.subr.mxu0 0.0
  %995 = vmatpush1.msra.mxu0 0.0
  %996 = vmatprep.subr.mxu0 0.0
  %997 = vmatpush1.msra.mxu0 0.0
  %998 = vmatprep.subr.mxu0 0.0
  %999 = vmatpush1.msra.mxu0 0.0
  %1000 = vmatprep.subr.mxu0 0.0
  %1001 = vmatpush1.msra.mxu0 0.0
  %1002 = vmatprep.subr.mxu0 0.0
  %1003 = vmatpush1.msra.mxu0 0.0
  %1004 = vmatprep.subr.mxu0 0.0
  %1005 = vmatpush1.msra.mxu0 0.0
  %1006 = vmatprep.subr.mxu0 0.0
  %1007 = vmatpush1.msra.mxu0 0.0
  %1008 = vmatprep.subr.mxu0 0.0
  %1009 = vmatpush1.msra.mxu0 0.0
  %1010 = vmatprep.subr.mxu0 0.0
  %1011 = vmatpush1.msra.mxu0 0.0
  %1012 = vmatprep.subr.mxu0 0.0
  %1013 = vmatpush1.msra.mxu0 0.0
  %1014 = vmatprep.subr.mxu0 0.0
  %1015 = vmatpush1.msra.mxu0 0.0
  %1016 = vmatprep.mubr.f32.mxu0 0.0
  %1017 = vmatmul.mubr.f32.gmra.mrb[0].mxu0 %v870
  %v1018 = vpop.f32.mrb[0].mxu0
  %v1019 = vadd.f32 0.0, %v1018
  %v1020 = vpop.f32.mrb[0].mxu0
  %v1021 = vadd.f32 0.0, %v1020
  %1022 = vmatprep.mubr.f32.mxu0 0.0
  %1023 = vmatmul.mubr.f32.gmra.mrb[0].mxu0 %v873
  %v1024 = vpop.f32.mrb[0].mxu0
  %v1025 = vadd.f32 0.0, %v1024
  %v1026 = vpop.f32.mrb[0].mxu0
  %v1027 = vadd.f32 0.0, %v1026
  %1028 = vdwg.mxu0
  %1029 = vmatprep.subr.mxu0 %v862
  %1030 = vmatpush1.msra.mxu0 %v861
  %1031 = vmatprep.subr.mxu0 0.0
  %1032 = vmatpush1.msra.mxu0 0.0
  %1033 = vmatprep.subr.mxu0 0.0
  %1034 = vmatpush1.msra.mxu0 0.0
  %1035 = vmatprep.subr.mxu0 0.0
  %1036 = vmatpush1.msra.mxu0 0.0
  %1037 = vmatprep.subr.mxu0 0.0
  %1038 = vmatpush1.msra.mxu0 0.0
  %1039 = vmatprep.subr.mxu0 0.0
  %1040 = vmatpush1.msra.mxu0 0.0
  %1041 = vmatprep.subr.mxu0 0.0
  %1042 = vmatpush1.msra.mxu0 0.0
  %1043 = vmatprep.subr.mxu0 0.0
  %1044 = vmatpush1.msra.mxu0 0.0
  %1045 = vmatprep.subr.mxu0 0.0
  %1046 = vmatpush1.msra.mxu0 0.0
  %1047 = vmatprep.subr.mxu0 0.0
  %1048 = vmatpush1.msra.mxu0 0.0
  %1049 = vmatprep.subr.mxu0 0.0
  %1050 = vmatpush1.msra.mxu0 0.0
  %1051 = vmatprep.subr.mxu0 0.0
  %1052 = vmatpush1.msra.mxu0 0.0
  %1053 = vmatprep.subr.mxu0 0.0
  %1054 = vmatpush1.msra.mxu0 0.0
  %1055 = vmatprep.subr.mxu0 0.0
  %1056 = vmatpush1.msra.mxu0 0.0
  %1057 = vmatprep.subr.mxu0 0.0
  %1058 = vmatpush1.msra.mxu0 0.0
  %1059 = vmatprep.subr.mxu0 0.0
  %1060 = vmatpush1.msra.mxu0 0.0
  %1061 = vmatprep.subr.mxu0 0.0
  %1062 = vmatpush1.msra.mxu0 0.0
  %1063 = vmatprep.subr.mxu0 0.0
  %1064 = vmatpush1.msra.mxu0 0.0
  %1065 = vmatprep.subr.mxu0 0.0
  %1066 = vmatpush1.msra.mxu0 0.0
  %1067 = vmatprep.subr.mxu0 0.0
  %1068 = vmatpush1.msra.mxu0 0.0
  %1069 = vmatprep.subr.mxu0 0.0
  %1070 = vmatpush1.msra.mxu0 0.0
  %1071 = vmatprep.subr.mxu0 0.0
  %1072 = vmatpush1.msra.mxu0 0.0
  %1073 = vmatprep.subr.mxu0 0.0
  %1074 = vmatpush1.msra.mxu0 0.0
  %1075 = vmatprep.subr.mxu0 0.0
  %1076 = vmatpush1.msra.mxu0 0.0
  %1077 = vmatprep.subr.mxu0 0.0
  %1078 = vmatpush1.msra.mxu0 0.0
  %1079 = vmatprep.subr.mxu0 0.0
  %1080 = vmatpush1.msra.mxu0 0.0
  %1081 = vmatprep.subr.mxu0 0.0
  %1082 = vmatpush1.msra.mxu0 0.0
  %1083 = vmatprep.subr.mxu0 0.0
  %1084 = vmatpush1.msra.mxu0 0.0
  %1085 = vmatprep.subr.mxu0 0.0
  %1086 = vmatpush1.msra.mxu0 0.0
  %1087 = vmatprep.subr.mxu0 0.0
  %1088 = vmatpush1.msra.mxu0 0.0
  %1089 = vmatprep.subr.mxu0 0.0
  %1090 = vmatpush1.msra.mxu0 0.0
  %1091 = vmatprep.subr.mxu0 0.0
  %1092 = vmatpush1.msra.mxu0 0.0
  %1093 = vmatprep.mubr.f32.mxu0 0.0
  %1094 = vmatmul.mubr.f32.gmra.mrb[0].mxu0 %v870
  %v1095 = vpop.f32.mrb[0].mxu0
  %v1096 = vadd.f32 0.0, %v1095
  %v1097 = vpop.f32.mrb[0].mxu0
  %v1098 = vadd.f32 0.0, %v1097
  %1099 = vmatprep.mubr.f32.mxu0 0.0
  %1100 = vmatmul.mubr.f32.gmra.mrb[0].mxu0 %v873
  %v1101 = vpop.f32.mrb[0].mxu0
  %v1102 = vadd.f32 0.0, %v1101
  %v1103 = vpop.f32.mrb[0].mxu0
  %v1104 = vadd.f32 0.0, %v1103
  %1105 = vdwg.mxu0
  %v1106 = vadd.f32 %v827, %v942
  %v1107 = vadd.f32 %v828, %v944
  %v1108 = vadd.f32 %v829, %v1019
  %v1109 = vadd.f32 %v830, %v1021
  %v1110 = vadd.f32 %v831, %v1096
  %v1111 = vadd.f32 %v832, %v1098
  %v1112 = vadd.f32 %v833, %v948
  %v1113 = vadd.f32 %v834, %v950
  %v1114 = vadd.f32 %v835, %v1025
  %v1115 = vadd.f32 %v836, %v1027
  %v1116 = vadd.f32 %v837, %v1102
  %v1117 = vadd.f32 %v838, %v1104
  %s1118 = scalar_lea.vmem %s2, 64
  %v1119 = vld [vmem:[%s1118] sm:$0xff]
  %v1120 = vld [vmem:[%s1118 + $0x8] sm:$0xff]
  %1121 = vrot.lane.b32.xlu0 %v39, 109
  %v1122 = vpop.permute.xlu0 %1121
  %1123 = vrot.lane.b32.xlu0 %v40, 109
  %v1124 = vpop.permute.xlu0 %1123
  %1125 = vrot.lane.b32.xlu0 %v41, 109
  %v1126 = vpop.permute.xlu0 %1125
  %1127 = vrot.lane.b32.xlu0 %v42, 109
  %v1128 = vpop.permute.xlu0 %1127
  %1129 = vrot.lane.b32.xlu0 %v43, 109
  %v1130 = vpop.permute.xlu0 %1129
  %1131 = vrot.lane.b32.xlu0 %v44, 109
  %v1132 = vpop.permute.xlu0 %1131
  %1133 = vrot.lane.b32.xlu0 %v45, 109
  %v1134 = vpop.permute.xlu0 %1133
  %vm1135 = vcmask 891904
  %v1136 = vsel %vm1135, %v1122, %v1124
  %v1137 = vsel %vm1135, %v1124, %v1126
  %v1138 = vsel %vm1135, %v1126, %v1128
  %v1139 = vsel %vm1135, %v1128, %v1130
  %v1140 = vsel %vm1135, %v1130, %v1132
  %v1141 = vsel %vm1135, %v1132, %v1134
  %v1149 = vsel %vm85, %v1119, 0
  %v1152 = vsel %vm85, %v1120, 0
  %1154 = vmatprep.subr.mxu0 %v1137
  %1155 = vmatpush1.msra.mxu0 %v1136
  %1156 = vmatprep.subr.mxu0 0.0
  %1157 = vmatpush1.msra.mxu0 0.0
  %1158 = vmatprep.subr.mxu0 0.0
  %1159 = vmatpush1.msra.mxu0 0.0
  %1160 = vmatprep.subr.mxu0 0.0
  %1161 = vmatpush1.msra.mxu0 0.0
  %1162 = vmatprep.subr.mxu0 0.0
  %1163 = vmatpush1.msra.mxu0 0.0
  %1164 = vmatprep.subr.mxu0 0.0
  %1165 = vmatpush1.msra.mxu0 0.0
  %1166 = vmatprep.subr.mxu0 0.0
  %1167 = vmatpush1.msra.mxu0 0.0
  %1168 = vmatprep.subr.mxu0 0.0
  %1169 = vmatpush1.msra.mxu0 0.0
  %1170 = vmatprep.subr.mxu0 0.0
  %1171 = vmatpush1.msra.mxu0 0.0
  %1172 = vmatprep.subr.mxu0 0.0
  %1173 = vmatpush1.msra.mxu0 0.0
  %1174 = vmatprep.subr.mxu0 0.0
  %1175 = vmatpush1.msra.mxu0 0.0
  %1176 = vmatprep.subr.mxu0 0.0
  %1177 = vmatpush1.msra.mxu0 0.0
  %1178 = vmatprep.subr.mxu0 0.0
  %1179 = vmatpush1.msra.mxu0 0.0
  %1180 = vmatprep.subr.mxu0 0.0
  %1181 = vmatpush1.msra.mxu0 0.0
  %1182 = vmatprep.subr.mxu0 0.0
  %1183 = vmatpush1.msra.mxu0 0.0
  %1184 = vmatprep.subr.mxu0 0.0
  %1185 = vmatpush1.msra.mxu0 0.0
  %1186 = vmatprep.subr.mxu0 0.0
  %1187 = vmatpush1.msra.mxu0 0.0
  %1188 = vmatprep.subr.mxu0 0.0
  %1189 = vmatpush1.msra.mxu0 0.0
  %1190 = vmatprep.subr.mxu0 0.0
  %1191 = vmatpush1.msra.mxu0 0.0
  %1192 = vmatprep.subr.mxu0 0.0
  %1193 = vmatpush1.msra.mxu0 0.0
  %1194 = vmatprep.subr.mxu0 0.0
  %1195 = vmatpush1.msra.mxu0 0.0
  %1196 = vmatprep.subr.mxu0 0.0
  %1197 = vmatpush1.msra.mxu0 0.0
  %1198 = vmatprep.subr.mxu0 0.0
  %1199 = vmatpush1.msra.mxu0 0.0
  %1200 = vmatprep.subr.mxu0 0.0
  %1201 = vmatpush1.msra.mxu0 0.0
  %1202 = vmatprep.subr.mxu0 0.0
  %1203 = vmatpush1.msra.mxu0 0.0
  %1204 = vmatprep.subr.mxu0 0.0
  %1205 = vmatpush1.msra.mxu0 0.0
  %1206 = vmatprep.subr.mxu0 0.0
  %1207 = vmatpush1.msra.mxu0 0.0
  %1208 = vmatprep.subr.mxu0 0.0
  %1209 = vmatpush1.msra.mxu0 0.0
  %1210 = vmatprep.subr.mxu0 0.0
  %1211 = vmatpush1.msra.mxu0 0.0
  %1212 = vmatprep.subr.mxu0 0.0
  %1213 = vmatpush1.msra.mxu0 0.0
  %1214 = vmatprep.subr.mxu0 0.0
  %1215 = vmatpush1.msra.mxu0 0.0
  %1216 = vmatprep.subr.mxu0 0.0
  %1217 = vmatpush1.msra.mxu0 0.0
  %1218 = vmatprep.mubr.f32.mxu0 0.0
  %1219 = vmatmul.mubr.f32.gmra.mrb[0].mxu0 %v1149
  %v1220 = vpop.f32.mrb[0].mxu0
  %v1221 = vadd.f32 0.0, %v1220
  %v1222 = vpop.f32.mrb[0].mxu0
  %v1223 = vadd.f32 0.0, %v1222
  %1224 = vmatprep.mubr.f32.mxu0 0.0
  %1225 = vmatmul.mubr.f32.gmra.mrb[0].mxu0 %v1152
  %v1226 = vpop.f32.mrb[0].mxu0
  %v1227 = vadd.f32 0.0, %v1226
  %v1228 = vpop.f32.mrb[0].mxu0
  %v1229 = vadd.f32 0.0, %v1228
  %1230 = vdwg.mxu0
  %1231 = vmatprep.subr.mxu0 %v1139
  %1232 = vmatpush1.msra.mxu0 %v1138
  %1233 = vmatprep.subr.mxu0 0.0
  %1234 = vmatpush1.msra.mxu0 0.0
  %1235 = vmatprep.subr.mxu0 0.0
  %1236 = vmatpush1.msra.mxu0 0.0
  %1237 = vmatprep.subr.mxu0 0.0
  %1238 = vmatpush1.msra.mxu0 0.0
  %1239 = vmatprep.subr.mxu0 0.0
  %1240 = vmatpush1.msra.mxu0 0.0
  %1241 = vmatprep.subr.mxu0 0.0
  %1242 = vmatpush1.msra.mxu0 0.0
  %1243 = vmatprep.subr.mxu0 0.0
  %1244 = vmatpush1.msra.mxu0 0.0
  %1245 = vmatprep.subr.mxu0 0.0
  %1246 = vmatpush1.msra.mxu0 0.0
  %1247 = vmatprep.subr.mxu0 0.0
  %1248 = vmatpush1.msra.mxu0 0.0
  %1249 = vmatprep.subr.mxu0 0.0
  %1250 = vmatpush1.msra.mxu0 0.0
  %1251 = vmatprep.subr.mxu0 0.0
  %1252 = vmatpush1.msra.mxu0 0.0
  %1253 = vmatprep.subr.mxu0 0.0
  %1254 = vmatpush1.msra.mxu0 0.0
  %1255 = vmatprep.subr.mxu0 0.0
  %1256 = vmatpush1.msra.mxu0 0.0
  %1257 = vmatprep.subr.mxu0 0.0
  %1258 = vmatpush1.msra.mxu0 0.0
  %1259 = vmatprep.subr.mxu0 0.0
  %1260 = vmatpush1.msra.mxu0 0.0
  %1261 = vmatprep.subr.mxu0 0.0
  %1262 = vmatpush1.msra.mxu0 0.0
  %1263 = vmatprep.subr.mxu0 0.0
  %1264 = vmatpush1.msra.mxu0 0.0
  %1265 = vmatprep.subr.mxu0 0.0
  %1266 = vmatpush1.msra.mxu0 0.0
  %1267 = vmatprep.subr.mxu0 0.0
  %1268 = vmatpush1.msra.mxu0 0.0
  %1269 = vmatprep.subr.mxu0 0.0
  %1270 = vmatpush1.msra.mxu0 0.0
  %1271 = vmatprep.subr.mxu0 0.0
  %1272 = vmatpush1.msra.mxu0 0.0
  %1273 = vmatprep.subr.mxu0 0.0
  %1274 = vmatpush1.msra.mxu0 0.0
  %1275 = vmatprep.subr.mxu0 0.0
  %1276 = vmatpush1.msra.mxu0 0.0
  %1277 = vmatprep.subr.mxu0 0.0
  %1278 = vmatpush1.msra.mxu0 0.0
  %1279 = vmatprep.subr.mxu0 0.0
  %1280 = vmatpush1.msra.mxu0 0.0
  %1281 = vmatprep.subr.mxu0 0.0
  %1282 = vmatpush1.msra.mxu0 0.0
  %1283 = vmatprep.subr.mxu0 0.0
  %1284 = vmatpush1.msra.mxu0 0.0
  %1285 = vmatprep.subr.mxu0 0.0
  %1286 = vmatpush1.msra.mxu0 0.0
  %1287 = vmatprep.subr.mxu0 0.0
  %1288 = vmatpush1.msra.mxu0 0.0
  %1289 = vmatprep.subr.mxu0 0.0
  %1290 = vmatpush1.msra.mxu0 0.0
  %1291 = vmatprep.subr.mxu0 0.0
  %1292 = vmatpush1.msra.mxu0 0.0
  %1293 = vmatprep.subr.mxu0 0.0
  %1294 = vmatpush1.msra.mxu0 0.0
  %1295 = vmatprep.mubr.f32.mxu0 0.0
  %1296 = vmatmul.mubr.f32.gmra.mrb[0].mxu0 %v1149
  %v1297 = vpop.f32.mrb[0].mxu0
  %v1298 = vadd.f32 0.0, %v1297
  %v1299 = vpop.f32.mrb[0].mxu0
  %v1300 = vadd.f32 0.0, %v1299
  %1301 = vmatprep.mubr.f32.mxu0 0.0
  %1302 = vmatmul.mubr.f32.gmra.mrb[0].mxu0 %v1152
  %v1303 = vpop.f32.mrb[0].mxu0
  %v1304 = vadd.f32 0.0, %v1303
  %v1305 = vpop.f32.mrb[0].mxu0
  %v1306 = vadd.f32 0.0, %v1305
  %1307 = vdwg.mxu0
  %1308 = vmatprep.subr.mxu0 %v1141
  %1309 = vmatpush1.msra.mxu0 %v1140
  %1310 = vmatprep.subr.mxu0 0.0
  %1311 = vmatpush1.msra.mxu0 0.0
  %1312 = vmatprep.subr.mxu0 0.0
  %1313 = vmatpush1.msra.mxu0 0.0
  %1314 = vmatprep.subr.mxu0 0.0
  %1315 = vmatpush1.msra.mxu0 0.0
  %1316 = vmatprep.subr.mxu0 0.0
  %1317 = vmatpush1.msra.mxu0 0.0
  %1318 = vmatprep.subr.mxu0 0.0
  %1319 = vmatpush1.msra.mxu0 0.0
  %1320 = vmatprep.subr.mxu0 0.0
  %1321 = vmatpush1.msra.mxu0 0.0
  %1322 = vmatprep.subr.mxu0 0.0
  %1323 = vmatpush1.msra.mxu0 0.0
  %1324 = vmatprep.subr.mxu0 0.0
  %1325 = vmatpush1.msra.mxu0 0.0
  %1326 = vmatprep.subr.mxu0 0.0
  %1327 = vmatpush1.msra.mxu0 0.0
  %1328 = vmatprep.subr.mxu0 0.0
  %1329 = vmatpush1.msra.mxu0 0.0
  %1330 = vmatprep.subr.mxu0 0.0
  %1331 = vmatpush1.msra.mxu0 0.0
  %1332 = vmatprep.subr.mxu0 0.0
  %1333 = vmatpush1.msra.mxu0 0.0
  %1334 = vmatprep.subr.mxu0 0.0
  %1335 = vmatpush1.msra.mxu0 0.0
  %1336 = vmatprep.subr.mxu0 0.0
  %1337 = vmatpush1.msra.mxu0 0.0
  %1338 = vmatprep.subr.mxu0 0.0
  %1339 = vmatpush1.msra.mxu0 0.0
  %1340 = vmatprep.subr.mxu0 0.0
  %1341 = vmatpush1.msra.mxu0 0.0
  %1342 = vmatprep.subr.mxu0 0.0
  %1343 = vmatpush1.msra.mxu0 0.0
  %1344 = vmatprep.subr.mxu0 0.0
  %1345 = vmatpush1.msra.mxu0 0.0
  %1346 = vmatprep.subr.mxu0 0.0
  %1347 = vmatpush1.msra.mxu0 0.0
  %1348 = vmatprep.subr.mxu0 0.0
  %1349 = vmatpush1.msra.mxu0 0.0
  %1350 = vmatprep.subr.mxu0 0.0
  %1351 = vmatpush1.msra.mxu0 0.0
  %1352 = vmatprep.subr.mxu0 0.0
  %1353 = vmatpush1.msra.mxu0 0.0
  %1354 = vmatprep.subr.mxu0 0.0
  %1355 = vmatpush1.msra.mxu0 0.0
  %1356 = vmatprep.subr.mxu0 0.0
  %1357 = vmatpush1.msra.mxu0 0.0
  %1358 = vmatprep.subr.mxu0 0.0
  %1359 = vmatpush1.msra.mxu0 0.0
  %1360 = vmatprep.subr.mxu0 0.0
  %1361 = vmatpush1.msra.mxu0 0.0
  %1362 = vmatprep.subr.mxu0 0.0
  %1363 = vmatpush1.msra.mxu0 0.0
  %1364 = vmatprep.subr.mxu0 0.0
  %1365 = vmatpush1.msra.mxu0 0.0
  %1366 = vmatprep.subr.mxu0 0.0
  %1367 = vmatpush1.msra.mxu0 0.0
  %1368 = vmatprep.subr.mxu0 0.0
  %1369 = vmatpush1.msra.mxu0 0.0
  %1370 = vmatprep.subr.mxu0 0.0
  %1371 = vmatpush1.msra.mxu0 0.0
  %1372 = vmatprep.mubr.f32.mxu0 0.0
  %1373 = vmatmul.mubr.f32.gmra.mrb[0].mxu0 %v1149
  %v1374 = vpop.f32.mrb[0].mxu0
  %v1375 = vadd.f32 0.0, %v1374
  %v1376 = vpop.f32.mrb[0].mxu0
  %v1377 = vadd.f32 0.0, %v1376
  %1378 = vmatprep.mubr.f32.mxu0 0.0
  %1379 = vmatmul.mubr.f32.gmra.mrb[0].mxu0 %v1152
  %v1380 = vpop.f32.mrb[0].mxu0
  %v1381 = vadd.f32 0.0, %v1380
  %v1382 = vpop.f32.mrb[0].mxu0
  %v1383 = vadd.f32 0.0, %v1382
  %1384 = vdwg.mxu0
  %v1385 = vadd.f32 %v1106, %v1221
  %v1386 = vadd.f32 %v1107, %v1223
  %v1387 = vadd.f32 %v1108, %v1298
  %v1388 = vadd.f32 %v1109, %v1300
  %v1389 = vadd.f32 %v1110, %v1375
  %v1390 = vadd.f32 %v1111, %v1377
  %v1391 = vadd.f32 %v1112, %v1227
  %v1392 = vadd.f32 %v1113, %v1229
  %v1393 = vadd.f32 %v1114, %v1304
  %v1394 = vadd.f32 %v1115, %v1306
  %v1395 = vadd.f32 %v1116, %v1381
  %v1396 = vadd.f32 %v1117, %v1383
  %s1397 = scalar_lea.vmem %s2, 80
  %v1398 = vld [vmem:[%s1397] sm:$0xff]
  %v1399 = vld [vmem:[%s1397 + $0x8] sm:$0xff]
  %1400 = vrot.lane.b32.xlu0 %v39, 108
  %v1401 = vpop.permute.xlu0 %1400
  %1402 = vrot.lane.b32.xlu0 %v40, 108
  %v1403 = vpop.permute.xlu0 %1402
  %1404 = vrot.lane.b32.xlu0 %v41, 108
  %v1405 = vpop.permute.xlu0 %1404
  %1406 = vrot.lane.b32.xlu0 %v42, 108
  %v1407 = vpop.permute.xlu0 %1406
  %1408 = vrot.lane.b32.xlu0 %v43, 108
  %v1409 = vpop.permute.xlu0 %1408
  %1410 = vrot.lane.b32.xlu0 %v44, 108
  %v1411 = vpop.permute.xlu0 %1410
  %1412 = vrot.lane.b32.xlu0 %v45, 108
  %v1413 = vpop.permute.xlu0 %1412
  %vm1414 = vcmask 883712
  %v1415 = vsel %vm1414, %v1401, %v1403
  %v1416 = vsel %vm1414, %v1403, %v1405
  %v1417 = vsel %vm1414, %v1405, %v1407
  %v1418 = vsel %vm1414, %v1407, %v1409
  %v1419 = vsel %vm1414, %v1409, %v1411
  %v1420 = vsel %vm1414, %v1411, %v1413
  %v1428 = vsel %vm85, %v1398, 0
  %v1431 = vsel %vm85, %v1399, 0
  %1433 = vmatprep.subr.mxu0 %v1416
  %1434 = vmatpush1.msra.mxu0 %v1415
  %1435 = vmatprep.subr.mxu0 0.0
  %1436 = vmatpush1.msra.mxu0 0.0
  %1437 = vmatprep.subr.mxu0 0.0
  %1438 = vmatpush1.msra.mxu0 0.0
  %1439 = vmatprep.subr.mxu0 0.0
  %1440 = vmatpush1.msra.mxu0 0.0
  %1441 = vmatprep.subr.mxu0 0.0
  %1442 = vmatpush1.msra.mxu0 0.0
  %1443 = vmatprep.subr.mxu0 0.0
  %1444 = vmatpush1.msra.mxu0 0.0
  %1445 = vmatprep.subr.mxu0 0.0
  %1446 = vmatpush1.msra.mxu0 0.0
  %1447 = vmatprep.subr.mxu0 0.0
  %1448 = vmatpush1.msra.mxu0 0.0
  %1449 = vmatprep.subr.mxu0 0.0
  %1450 = vmatpush1.msra.mxu0 0.0
  %1451 = vmatprep.subr.mxu0 0.0
  %1452 = vmatpush1.msra.mxu0 0.0
  %1453 = vmatprep.subr.mxu0 0.0
  %1454 = vmatpush1.msra.mxu0 0.0
  %1455 = vmatprep.subr.mxu0 0.0
  %1456 = vmatpush1.msra.mxu0 0.0
  %1457 = vmatprep.subr.mxu0 0.0
  %1458 = vmatpush1.msra.mxu0 0.0
  %1459 = vmatprep.subr.mxu0 0.0
  %1460 = vmatpush1.msra.mxu0 0.0
  %1461 = vmatprep.subr.mxu0 0.0
  %1462 = vmatpush1.msra.mxu0 0.0
  %1463 = vmatprep.subr.mxu0 0.0
  %1464 = vmatpush1.msra.mxu0 0.0
  %1465 = vmatprep.subr.mxu0 0.0
  %1466 = vmatpush1.msra.mxu0 0.0
  %1467 = vmatprep.subr.mxu0 0.0
  %1468 = vmatpush1.msra.mxu0 0.0
  %1469 = vmatprep.subr.mxu0 0.0
  %1470 = vmatpush1.msra.mxu0 0.0
  %1471 = vmatprep.subr.mxu0 0.0
  %1472 = vmatpush1.msra.mxu0 0.0
  %1473 = vmatprep.subr.mxu0 0.0
  %1474 = vmatpush1.msra.mxu0 0.0
  %1475 = vmatprep.subr.mxu0 0.0
  %1476 = vmatpush1.msra.mxu0 0.0
  %1477 = vmatprep.subr.mxu0 0.0
  %1478 = vmatpush1.msra.mxu0 0.0
  %1479 = vmatprep.subr.mxu0 0.0
  %1480 = vmatpush1.msra.mxu0 0.0
  %1481 = vmatprep.subr.mxu0 0.0
  %1482 = vmatpush1.msra.mxu0 0.0
  %1483 = vmatprep.subr.mxu0 0.0
  %1484 = vmatpush1.msra.mxu0 0.0
  %1485 = vmatprep.subr.mxu0 0.0
  %1486 = vmatpush1.msra.mxu0 0.0
  %1487 = vmatprep.subr.mxu0 0.0
  %1488 = vmatpush1.msra.mxu0 0.0
  %1489 = vmatprep.subr.mxu0 0.0
  %1490 = vmatpush1.msra.mxu0 0.0
  %1491 = vmatprep.subr.mxu0 0.0
  %1492 = vmatpush1.msra.mxu0 0.0
  %1493 = vmatprep.subr.mxu0 0.0
  %1494 = vmatpush1.msra.mxu0 0.0
  %1495 = vmatprep.subr.mxu0 0.0
  %1496 = vmatpush1.msra.mxu0 0.0
  %1497 = vmatprep.mubr.f32.mxu0 0.0
  %1498 = vmatmul.mubr.f32.gmra.mrb[0].mxu0 %v1428
  %v1499 = vpop.f32.mrb[0].mxu0
  %v1500 = vadd.f32 0.0, %v1499
  %v1501 = vpop.f32.mrb[0].mxu0
  %v1502 = vadd.f32 0.0, %v1501
  %1503 = vmatprep.mubr.f32.mxu0 0.0
  %1504 = vmatmul.mubr.f32.gmra.mrb[0].mxu0 %v1431
  %v1505 = vpop.f32.mrb[0].mxu0
  %v1506 = vadd.f32 0.0, %v1505
  %v1507 = vpop.f32.mrb[0].mxu0
  %v1508 = vadd.f32 0.0, %v1507
  %1509 = vdwg.mxu0
  %1510 = vmatprep.subr.mxu0 %v1418
  %1511 = vmatpush1.msra.mxu0 %v1417
  %1512 = vmatprep.subr.mxu0 0.0
  %1513 = vmatpush1.msra.mxu0 0.0
  %1514 = vmatprep.subr.mxu0 0.0
  %1515 = vmatpush1.msra.mxu0 0.0
  %1516 = vmatprep.subr.mxu0 0.0
  %1517 = vmatpush1.msra.mxu0 0.0
  %1518 = vmatprep.subr.mxu0 0.0
  %1519 = vmatpush1.msra.mxu0 0.0
  %1520 = vmatprep.subr.mxu0 0.0
  %1521 = vmatpush1.msra.mxu0 0.0
  %1522 = vmatprep.subr.mxu0 0.0
  %1523 = vmatpush1.msra.mxu0 0.0
  %1524 = vmatprep.subr.mxu0 0.0
  %1525 = vmatpush1.msra.mxu0 0.0
  %1526 = vmatprep.subr.mxu0 0.0
  %1527 = vmatpush1.msra.mxu0 0.0
  %1528 = vmatprep.subr.mxu0 0.0
  %1529 = vmatpush1.msra.mxu0 0.0
  %1530 = vmatprep.subr.mxu0 0.0
  %1531 = vmatpush1.msra.mxu0 0.0
  %1532 = vmatprep.subr.mxu0 0.0
  %1533 = vmatpush1.msra.mxu0 0.0
  %1534 = vmatprep.subr.mxu0 0.0
  %1535 = vmatpush1.msra.mxu0 0.0
  %1536 = vmatprep.subr.mxu0 0.0
  %1537 = vmatpush1.msra.mxu0 0.0
  %1538 = vmatprep.subr.mxu0 0.0
  %1539 = vmatpush1.msra.mxu0 0.0
  %1540 = vmatprep.subr.mxu0 0.0
  %1541 = vmatpush1.msra.mxu0 0.0
  %1542 = vmatprep.subr.mxu0 0.0
  %1543 = vmatpush1.msra.mxu0 0.0
  %1544 = vmatprep.subr.mxu0 0.0
  %1545 = vmatpush1.msra.mxu0 0.0
  %1546 = vmatprep.subr.mxu0 0.0
  %1547 = vmatpush1.msra.mxu0 0.0
  %1548 = vmatprep.subr.mxu0 0.0
  %1549 = vmatpush1.msra.mxu0 0.0
  %1550 = vmatprep.subr.mxu0 0.0
  %1551 = vmatpush1.msra.mxu0 0.0
  %1552 = vmatprep.subr.mxu0 0.0
  %1553 = vmatpush1.msra.mxu0 0.0
  %1554 = vmatprep.subr.mxu0 0.0
  %1555 = vmatpush1.msra.mxu0 0.0
  %1556 = vmatprep.subr.mxu0 0.0
  %1557 = vmatpush1.msra.mxu0 0.0
  %1558 = vmatprep.subr.mxu0 0.0
  %1559 = vmatpush1.msra.mxu0 0.0
  %1560 = vmatprep.subr.mxu0 0.0
  %1561 = vmatpush1.msra.mxu0 0.0
  %1562 = vmatprep.subr.mxu0 0.0
  %1563 = vmatpush1.msra.mxu0 0.0
  %1564 = vmatprep.subr.mxu0 0.0
  %1565 = vmatpush1.msra.mxu0 0.0
  %1566 = vmatprep.subr.mxu0 0.0
  %1567 = vmatpush1.msra.mxu0 0.0
  %1568 = vmatprep.subr.mxu0 0.0
  %1569 = vmatpush1.msra.mxu0 0.0
  %1570 = vmatprep.subr.mxu0 0.0
  %1571 = vmatpush1.msra.mxu0 0.0
  %1572 = vmatprep.subr.mxu0 0.0
  %1573 = vmatpush1.msra.mxu0 0.0
  %1574 = vmatprep.mubr.f32.mxu0 0.0
  %1575 = vmatmul.mubr.f32.gmra.mrb[0].mxu0 %v1428
  %v1576 = vpop.f32.mrb[0].mxu0
  %v1577 = vadd.f32 0.0, %v1576
  %v1578 = vpop.f32.mrb[0].mxu0
  %v1579 = vadd.f32 0.0, %v1578
  %1580 = vmatprep.mubr.f32.mxu0 0.0
  %1581 = vmatmul.mubr.f32.gmra.mrb[0].mxu0 %v1431
  %v1582 = vpop.f32.mrb[0].mxu0
  %v1583 = vadd.f32 0.0, %v1582
  %v1584 = vpop.f32.mrb[0].mxu0
  %v1585 = vadd.f32 0.0, %v1584
  %1586 = vdwg.mxu0
  %1587 = vmatprep.subr.mxu0 %v1420
  %1588 = vmatpush1.msra.mxu0 %v1419
  %1589 = vmatprep.subr.mxu0 0.0
  %1590 = vmatpush1.msra.mxu0 0.0
  %1591 = vmatprep.subr.mxu0 0.0
  %1592 = vmatpush1.msra.mxu0 0.0
  %1593 = vmatprep.subr.mxu0 0.0
  %1594 = vmatpush1.msra.mxu0 0.0
  %1595 = vmatprep.subr.mxu0 0.0
  %1596 = vmatpush1.msra.mxu0 0.0
  %1597 = vmatprep.subr.mxu0 0.0
  %1598 = vmatpush1.msra.mxu0 0.0
  %1599 = vmatprep.subr.mxu0 0.0
  %1600 = vmatpush1.msra.mxu0 0.0
  %1601 = vmatprep.subr.mxu0 0.0
  %1602 = vmatpush1.msra.mxu0 0.0
  %1603 = vmatprep.subr.mxu0 0.0
  %1604 = vmatpush1.msra.mxu0 0.0
  %1605 = vmatprep.subr.mxu0 0.0
  %1606 = vmatpush1.msra.mxu0 0.0
  %1607 = vmatprep.subr.mxu0 0.0
  %1608 = vmatpush1.msra.mxu0 0.0
  %1609 = vmatprep.subr.mxu0 0.0
  %1610 = vmatpush1.msra.mxu0 0.0
  %1611 = vmatprep.subr.mxu0 0.0
  %1612 = vmatpush1.msra.mxu0 0.0
  %1613 = vmatprep.subr.mxu0 0.0
  %1614 = vmatpush1.msra.mxu0 0.0
  %1615 = vmatprep.subr.mxu0 0.0
  %1616 = vmatpush1.msra.mxu0 0.0
  %1617 = vmatprep.subr.mxu0 0.0
  %1618 = vmatpush1.msra.mxu0 0.0
  %1619 = vmatprep.subr.mxu0 0.0
  %1620 = vmatpush1.msra.mxu0 0.0
  %1621 = vmatprep.subr.mxu0 0.0
  %1622 = vmatpush1.msra.mxu0 0.0
  %1623 = vmatprep.subr.mxu0 0.0
  %1624 = vmatpush1.msra.mxu0 0.0
  %1625 = vmatprep.subr.mxu0 0.0
  %1626 = vmatpush1.msra.mxu0 0.0
  %1627 = vmatprep.subr.mxu0 0.0
  %1628 = vmatpush1.msra.mxu0 0.0
  %1629 = vmatprep.subr.mxu0 0.0
  %1630 = vmatpush1.msra.mxu0 0.0
  %1631 = vmatprep.subr.mxu0 0.0
  %1632 = vmatpush1.msra.mxu0 0.0
  %1633 = vmatprep.subr.mxu0 0.0
  %1634 = vmatpush1.msra.mxu0 0.0
  %1635 = vmatprep.subr.mxu0 0.0
  %1636 = vmatpush1.msra.mxu0 0.0
  %1637 = vmatprep.subr.mxu0 0.0
  %1638 = vmatpush1.msra.mxu0 0.0
  %1639 = vmatprep.subr.mxu0 0.0
  %1640 = vmatpush1.msra.mxu0 0.0
  %1641 = vmatprep.subr.mxu0 0.0
  %1642 = vmatpush1.msra.mxu0 0.0
  %1643 = vmatprep.subr.mxu0 0.0
  %1644 = vmatpush1.msra.mxu0 0.0
  %1645 = vmatprep.subr.mxu0 0.0
  %1646 = vmatpush1.msra.mxu0 0.0
  %1647 = vmatprep.subr.mxu0 0.0
  %1648 = vmatpush1.msra.mxu0 0.0
  %1649 = vmatprep.subr.mxu0 0.0
  %1650 = vmatpush1.msra.mxu0 0.0
  %1651 = vmatprep.mubr.f32.mxu0 0.0
  %1652 = vmatmul.mubr.f32.gmra.mrb[0].mxu0 %v1428
  %v1653 = vpop.f32.mrb[0].mxu0
  %v1654 = vadd.f32 0.0, %v1653
  %v1655 = vpop.f32.mrb[0].mxu0
  %v1656 = vadd.f32 0.0, %v1655
  %1657 = vmatprep.mubr.f32.mxu0 0.0
  %1658 = vmatmul.mubr.f32.gmra.mrb[0].mxu0 %v1431
  %v1659 = vpop.f32.mrb[0].mxu0
  %v1660 = vadd.f32 0.0, %v1659
  %v1661 = vpop.f32.mrb[0].mxu0
  %v1662 = vadd.f32 0.0, %v1661
  %1663 = vdwg.mxu0
  %v1664 = vadd.f32 %v1385, %v1500
  %v1665 = vadd.f32 %v1386, %v1502
  %v1666 = vadd.f32 %v1387, %v1577
  %v1667 = vadd.f32 %v1388, %v1579
  %v1668 = vadd.f32 %v1389, %v1654
  %v1669 = vadd.f32 %v1390, %v1656
  %v1670 = vadd.f32 %v1391, %v1506
  %v1671 = vadd.f32 %v1392, %v1508
  %v1672 = vadd.f32 %v1393, %v1583
  %v1673 = vadd.f32 %v1394, %v1585
  %v1674 = vadd.f32 %v1395, %v1660
  %v1675 = vadd.f32 %v1396, %v1662
  %s1676 = scalar_lea.vmem %s2, 96
  %v1677 = vld [vmem:[%s1676] sm:$0xff]
  %v1678 = vld [vmem:[%s1676 + $0x8] sm:$0xff]
  %1679 = vrot.lane.b32.xlu0 %v39, 92
  %v1680 = vpop.permute.xlu0 %1679
  %1681 = vrot.lane.b32.xlu0 %v40, 92
  %v1682 = vpop.permute.xlu0 %1681
  %1683 = vrot.lane.b32.xlu0 %v41, 92
  %v1684 = vpop.permute.xlu0 %1683
  %1685 = vrot.lane.b32.xlu0 %v42, 92
  %v1686 = vpop.permute.xlu0 %1685
  %1687 = vrot.lane.b32.xlu0 %v43, 92
  %v1688 = vpop.permute.xlu0 %1687
  %1689 = vrot.lane.b32.xlu0 %v44, 92
  %v1690 = vpop.permute.xlu0 %1689
  %1691 = vrot.lane.b32.xlu0 %v45, 92
  %v1692 = vpop.permute.xlu0 %1691
  %vm1693 = vcmask 752640
  %v1694 = vsel %vm1693, %v1680, %v1682
  %v1695 = vsel %vm1693, %v1682, %v1684
  %v1696 = vsel %vm1693, %v1684, %v1686
  %v1697 = vsel %vm1693, %v1686, %v1688
  %v1698 = vsel %vm1693, %v1688, %v1690
  %v1699 = vsel %vm1693, %v1690, %v1692
  %v1707 = vsel %vm85, %v1677, 0
  %v1710 = vsel %vm85, %v1678, 0
  %1712 = vmatprep.subr.mxu0 %v1695
  %1713 = vmatpush1.msra.mxu0 %v1694
  %1714 = vmatprep.subr.mxu0 0.0
  %1715 = vmatpush1.msra.mxu0 0.0
  %1716 = vmatprep.subr.mxu0 0.0
  %1717 = vmatpush1.msra.mxu0 0.0
  %1718 = vmatprep.subr.mxu0 0.0
  %1719 = vmatpush1.msra.mxu0 0.0
  %1720 = vmatprep.subr.mxu0 0.0
  %1721 = vmatpush1.msra.mxu0 0.0
  %1722 = vmatprep.subr.mxu0 0.0
  %1723 = vmatpush1.msra.mxu0 0.0
  %1724 = vmatprep.subr.mxu0 0.0
  %1725 = vmatpush1.msra.mxu0 0.0
  %1726 = vmatprep.subr.mxu0 0.0
  %1727 = vmatpush1.msra.mxu0 0.0
  %1728 = vmatprep.subr.mxu0 0.0
  %1729 = vmatpush1.msra.mxu0 0.0
  %1730 = vmatprep.subr.mxu0 0.0
  %1731 = vmatpush1.msra.mxu0 0.0
  %1732 = vmatprep.subr.mxu0 0.0
  %1733 = vmatpush1.msra.mxu0 0.0
  %1734 = vmatprep.subr.mxu0 0.0
  %1735 = vmatpush1.msra.mxu0 0.0
  %1736 = vmatprep.subr.mxu0 0.0
  %1737 = vmatpush1.msra.mxu0 0.0
  %1738 = vmatprep.subr.mxu0 0.0
  %1739 = vmatpush1.msra.mxu0 0.0
  %1740 = vmatprep.subr.mxu0 0.0
  %1741 = vmatpush1.msra.mxu0 0.0
  %1742 = vmatprep.subr.mxu0 0.0
  %1743 = vmatpush1.msra.mxu0 0.0
  %1744 = vmatprep.subr.mxu0 0.0
  %1745 = vmatpush1.msra.mxu0 0.0
  %1746 = vmatprep.subr.mxu0 0.0
  %1747 = vmatpush1.msra.mxu0 0.0
  %1748 = vmatprep.subr.mxu0 0.0
  %1749 = vmatpush1.msra.mxu0 0.0
  %1750 = vmatprep.subr.mxu0 0.0
  %1751 = vmatpush1.msra.mxu0 0.0
  %1752 = vmatprep.subr.mxu0 0.0
  %1753 = vmatpush1.msra.mxu0 0.0
  %1754 = vmatprep.subr.mxu0 0.0
  %1755 = vmatpush1.msra.mxu0 0.0
  %1756 = vmatprep.subr.mxu0 0.0
  %1757 = vmatpush1.msra.mxu0 0.0
  %1758 = vmatprep.subr.mxu0 0.0
  %1759 = vmatpush1.msra.mxu0 0.0
  %1760 = vmatprep.subr.mxu0 0.0
  %1761 = vmatpush1.msra.mxu0 0.0
  %1762 = vmatprep.subr.mxu0 0.0
  %1763 = vmatpush1.msra.mxu0 0.0
  %1764 = vmatprep.subr.mxu0 0.0
  %1765 = vmatpush1.msra.mxu0 0.0
  %1766 = vmatprep.subr.mxu0 0.0
  %1767 = vmatpush1.msra.mxu0 0.0
  %1768 = vmatprep.subr.mxu0 0.0
  %1769 = vmatpush1.msra.mxu0 0.0
  %1770 = vmatprep.subr.mxu0 0.0
  %1771 = vmatpush1.msra.mxu0 0.0
  %1772 = vmatprep.subr.mxu0 0.0
  %1773 = vmatpush1.msra.mxu0 0.0
  %1774 = vmatprep.subr.mxu0 0.0
  %1775 = vmatpush1.msra.mxu0 0.0
  %1776 = vmatprep.mubr.f32.mxu0 0.0
  %1777 = vmatmul.mubr.f32.gmra.mrb[0].mxu0 %v1707
  %v1778 = vpop.f32.mrb[0].mxu0
  %v1779 = vadd.f32 0.0, %v1778
  %v1780 = vpop.f32.mrb[0].mxu0
  %v1781 = vadd.f32 0.0, %v1780
  %1782 = vmatprep.mubr.f32.mxu0 0.0
  %1783 = vmatmul.mubr.f32.gmra.mrb[0].mxu0 %v1710
  %v1784 = vpop.f32.mrb[0].mxu0
  %v1785 = vadd.f32 0.0, %v1784
  %v1786 = vpop.f32.mrb[0].mxu0
  %v1787 = vadd.f32 0.0, %v1786
  %1788 = vdwg.mxu0
  %1789 = vmatprep.subr.mxu0 %v1697
  %1790 = vmatpush1.msra.mxu0 %v1696
  %1791 = vmatprep.subr.mxu0 0.0
  %1792 = vmatpush1.msra.mxu0 0.0
  %1793 = vmatprep.subr.mxu0 0.0
  %1794 = vmatpush1.msra.mxu0 0.0
  %1795 = vmatprep.subr.mxu0 0.0
  %1796 = vmatpush1.msra.mxu0 0.0
  %1797 = vmatprep.subr.mxu0 0.0
  %1798 = vmatpush1.msra.mxu0 0.0
  %1799 = vmatprep.subr.mxu0 0.0
  %1800 = vmatpush1.msra.mxu0 0.0
  %1801 = vmatprep.subr.mxu0 0.0
  %1802 = vmatpush1.msra.mxu0 0.0
  %1803 = vmatprep.subr.mxu0 0.0
  %1804 = vmatpush1.msra.mxu0 0.0
  %1805 = vmatprep.subr.mxu0 0.0
  %1806 = vmatpush1.msra.mxu0 0.0
  %1807 = vmatprep.subr.mxu0 0.0
  %1808 = vmatpush1.msra.mxu0 0.0
  %1809 = vmatprep.subr.mxu0 0.0
  %1810 = vmatpush1.msra.mxu0 0.0
  %1811 = vmatprep.subr.mxu0 0.0
  %1812 = vmatpush1.msra.mxu0 0.0
  %1813 = vmatprep.subr.mxu0 0.0
  %1814 = vmatpush1.msra.mxu0 0.0
  %1815 = vmatprep.subr.mxu0 0.0
  %1816 = vmatpush1.msra.mxu0 0.0
  %1817 = vmatprep.subr.mxu0 0.0
  %1818 = vmatpush1.msra.mxu0 0.0
  %1819 = vmatprep.subr.mxu0 0.0
  %1820 = vmatpush1.msra.mxu0 0.0
  %1821 = vmatprep.subr.mxu0 0.0
  %1822 = vmatpush1.msra.mxu0 0.0
  %1823 = vmatprep.subr.mxu0 0.0
  %1824 = vmatpush1.msra.mxu0 0.0
  %1825 = vmatprep.subr.mxu0 0.0
  %1826 = vmatpush1.msra.mxu0 0.0
  %1827 = vmatprep.subr.mxu0 0.0
  %1828 = vmatpush1.msra.mxu0 0.0
  %1829 = vmatprep.subr.mxu0 0.0
  %1830 = vmatpush1.msra.mxu0 0.0
  %1831 = vmatprep.subr.mxu0 0.0
  %1832 = vmatpush1.msra.mxu0 0.0
  %1833 = vmatprep.subr.mxu0 0.0
  %1834 = vmatpush1.msra.mxu0 0.0
  %1835 = vmatprep.subr.mxu0 0.0
  %1836 = vmatpush1.msra.mxu0 0.0
  %1837 = vmatprep.subr.mxu0 0.0
  %1838 = vmatpush1.msra.mxu0 0.0
  %1839 = vmatprep.subr.mxu0 0.0
  %1840 = vmatpush1.msra.mxu0 0.0
  %1841 = vmatprep.subr.mxu0 0.0
  %1842 = vmatpush1.msra.mxu0 0.0
  %1843 = vmatprep.subr.mxu0 0.0
  %1844 = vmatpush1.msra.mxu0 0.0
  %1845 = vmatprep.subr.mxu0 0.0
  %1846 = vmatpush1.msra.mxu0 0.0
  %1847 = vmatprep.subr.mxu0 0.0
  %1848 = vmatpush1.msra.mxu0 0.0
  %1849 = vmatprep.subr.mxu0 0.0
  %1850 = vmatpush1.msra.mxu0 0.0
  %1851 = vmatprep.subr.mxu0 0.0
  %1852 = vmatpush1.msra.mxu0 0.0
  %1853 = vmatprep.mubr.f32.mxu0 0.0
  %1854 = vmatmul.mubr.f32.gmra.mrb[0].mxu0 %v1707
  %v1855 = vpop.f32.mrb[0].mxu0
  %v1856 = vadd.f32 0.0, %v1855
  %v1857 = vpop.f32.mrb[0].mxu0
  %v1858 = vadd.f32 0.0, %v1857
  %1859 = vmatprep.mubr.f32.mxu0 0.0
  %1860 = vmatmul.mubr.f32.gmra.mrb[0].mxu0 %v1710
  %v1861 = vpop.f32.mrb[0].mxu0
  %v1862 = vadd.f32 0.0, %v1861
  %v1863 = vpop.f32.mrb[0].mxu0
  %v1864 = vadd.f32 0.0, %v1863
  %1865 = vdwg.mxu0
  %1866 = vmatprep.subr.mxu0 %v1699
  %1867 = vmatpush1.msra.mxu0 %v1698
  %1868 = vmatprep.subr.mxu0 0.0
  %1869 = vmatpush1.msra.mxu0 0.0
  %1870 = vmatprep.subr.mxu0 0.0
  %1871 = vmatpush1.msra.mxu0 0.0
  %1872 = vmatprep.subr.mxu0 0.0
  %1873 = vmatpush1.msra.mxu0 0.0
  %1874 = vmatprep.subr.mxu0 0.0
  %1875 = vmatpush1.msra.mxu0 0.0
  %1876 = vmatprep.subr.mxu0 0.0
  %1877 = vmatpush1.msra.mxu0 0.0
  %1878 = vmatprep.subr.mxu0 0.0
  %1879 = vmatpush1.msra.mxu0 0.0
  %1880 = vmatprep.subr.mxu0 0.0
  %1881 = vmatpush1.msra.mxu0 0.0
  %1882 = vmatprep.subr.mxu0 0.0
  %1883 = vmatpush1.msra.mxu0 0.0
  %1884 = vmatprep.subr.mxu0 0.0
  %1885 = vmatpush1.msra.mxu0 0.0
  %1886 = vmatprep.subr.mxu0 0.0
  %1887 = vmatpush1.msra.mxu0 0.0
  %1888 = vmatprep.subr.mxu0 0.0
  %1889 = vmatpush1.msra.mxu0 0.0
  %1890 = vmatprep.subr.mxu0 0.0
  %1891 = vmatpush1.msra.mxu0 0.0
  %1892 = vmatprep.subr.mxu0 0.0
  %1893 = vmatpush1.msra.mxu0 0.0
  %1894 = vmatprep.subr.mxu0 0.0
  %1895 = vmatpush1.msra.mxu0 0.0
  %1896 = vmatprep.subr.mxu0 0.0
  %1897 = vmatpush1.msra.mxu0 0.0
  %1898 = vmatprep.subr.mxu0 0.0
  %1899 = vmatpush1.msra.mxu0 0.0
  %1900 = vmatprep.subr.mxu0 0.0
  %1901 = vmatpush1.msra.mxu0 0.0
  %1902 = vmatprep.subr.mxu0 0.0
  %1903 = vmatpush1.msra.mxu0 0.0
  %1904 = vmatprep.subr.mxu0 0.0
  %1905 = vmatpush1.msra.mxu0 0.0
  %1906 = vmatprep.subr.mxu0 0.0
  %1907 = vmatpush1.msra.mxu0 0.0
  %1908 = vmatprep.subr.mxu0 0.0
  %1909 = vmatpush1.msra.mxu0 0.0
  %1910 = vmatprep.subr.mxu0 0.0
  %1911 = vmatpush1.msra.mxu0 0.0
  %1912 = vmatprep.subr.mxu0 0.0
  %1913 = vmatpush1.msra.mxu0 0.0
  %1914 = vmatprep.subr.mxu0 0.0
  %1915 = vmatpush1.msra.mxu0 0.0
  %1916 = vmatprep.subr.mxu0 0.0
  %1917 = vmatpush1.msra.mxu0 0.0
  %1918 = vmatprep.subr.mxu0 0.0
  %1919 = vmatpush1.msra.mxu0 0.0
  %1920 = vmatprep.subr.mxu0 0.0
  %1921 = vmatpush1.msra.mxu0 0.0
  %1922 = vmatprep.subr.mxu0 0.0
  %1923 = vmatpush1.msra.mxu0 0.0
  %1924 = vmatprep.subr.mxu0 0.0
  %1925 = vmatpush1.msra.mxu0 0.0
  %1926 = vmatprep.subr.mxu0 0.0
  %1927 = vmatpush1.msra.mxu0 0.0
  %1928 = vmatprep.subr.mxu0 0.0
  %1929 = vmatpush1.msra.mxu0 0.0
  %1930 = vmatprep.mubr.f32.mxu0 0.0
  %1931 = vmatmul.mubr.f32.gmra.mrb[0].mxu0 %v1707
  %v1932 = vpop.f32.mrb[0].mxu0
  %v1933 = vadd.f32 0.0, %v1932
  %v1934 = vpop.f32.mrb[0].mxu0
  %v1935 = vadd.f32 0.0, %v1934
  %1936 = vmatprep.mubr.f32.mxu0 0.0
  %1937 = vmatmul.mubr.f32.gmra.mrb[0].mxu0 %v1710
  %v1938 = vpop.f32.mrb[0].mxu0
  %v1939 = vadd.f32 0.0, %v1938
  %v1940 = vpop.f32.mrb[0].mxu0
  %v1941 = vadd.f32 0.0, %v1940
  %1942 = vdwg.mxu0
  %v1943 = vadd.f32 %v1664, %v1779
  %v1944 = vadd.f32 %v1665, %v1781
  %v1945 = vadd.f32 %v1666, %v1856
  %v1946 = vadd.f32 %v1667, %v1858
  %v1947 = vadd.f32 %v1668, %v1933
  %v1948 = vadd.f32 %v1669, %v1935
  %v1949 = vadd.f32 %v1670, %v1785
  %v1950 = vadd.f32 %v1671, %v1787
  %v1951 = vadd.f32 %v1672, %v1862
  %v1952 = vadd.f32 %v1673, %v1864
  %v1953 = vadd.f32 %v1674, %v1939
  %v1954 = vadd.f32 %v1675, %v1941
  %s1955 = scalar_lea.vmem %s2, 112
  %v1956 = vld [vmem:[%s1955] sm:$0xff]
  %v1957 = vld [vmem:[%s1955 + $0x8] sm:$0xff]
  %1958 = vrot.lane.b32.xlu0 %v39, 91
  %v1959 = vpop.permute.xlu0 %1958
  %1960 = vrot.lane.b32.xlu0 %v40, 91
  %v1961 = vpop.permute.xlu0 %1960
  %1962 = vrot.lane.b32.xlu0 %v41, 91
  %v1963 = vpop.permute.xlu0 %1962
  %1964 = vrot.lane.b32.xlu0 %v42, 91
  %v1965 = vpop.permute.xlu0 %1964
  %1966 = vrot.lane.b32.xlu0 %v43, 91
  %v1967 = vpop.permute.xlu0 %1966
  %1968 = vrot.lane.b32.xlu0 %v44, 91
  %v1969 = vpop.permute.xlu0 %1968
  %1970 = vrot.lane.b32.xlu0 %v45, 91
  %v1971 = vpop.permute.xlu0 %1970
  %vm1972 = vcmask 744448
  %v1973 = vsel %vm1972, %v1959, %v1961
  %v1974 = vsel %vm1972, %v1961, %v1963
  %v1975 = vsel %vm1972, %v1963, %v1965
  %v1976 = vsel %vm1972, %v1965, %v1967
  %v1977 = vsel %vm1972, %v1967, %v1969
  %v1978 = vsel %vm1972, %v1969, %v1971
  %v1986 = vsel %vm85, %v1956, 0
  %v1989 = vsel %vm85, %v1957, 0
  %1991 = vmatprep.subr.mxu0 %v1974
  %1992 = vmatpush1.msra.mxu0 %v1973
  %1993 = vmatprep.subr.mxu0 0.0
  %1994 = vmatpush1.msra.mxu0 0.0
  %1995 = vmatprep.subr.mxu0 0.0
  %1996 = vmatpush1.msra.mxu0 0.0
  %1997 = vmatprep.subr.mxu0 0.0
  %1998 = vmatpush1.msra.mxu0 0.0
  %1999 = vmatprep.subr.mxu0 0.0
  %2000 = vmatpush1.msra.mxu0 0.0
  %2001 = vmatprep.subr.mxu0 0.0
  %2002 = vmatpush1.msra.mxu0 0.0
  %2003 = vmatprep.subr.mxu0 0.0
  %2004 = vmatpush1.msra.mxu0 0.0
  %2005 = vmatprep.subr.mxu0 0.0
  %2006 = vmatpush1.msra.mxu0 0.0
  %2007 = vmatprep.subr.mxu0 0.0
  %2008 = vmatpush1.msra.mxu0 0.0
  %2009 = vmatprep.subr.mxu0 0.0
  %2010 = vmatpush1.msra.mxu0 0.0
  %2011 = vmatprep.subr.mxu0 0.0
  %2012 = vmatpush1.msra.mxu0 0.0
  %2013 = vmatprep.subr.mxu0 0.0
  %2014 = vmatpush1.msra.mxu0 0.0
  %2015 = vmatprep.subr.mxu0 0.0
  %2016 = vmatpush1.msra.mxu0 0.0
  %2017 = vmatprep.subr.mxu0 0.0
  %2018 = vmatpush1.msra.mxu0 0.0
  %2019 = vmatprep.subr.mxu0 0.0
  %2020 = vmatpush1.msra.mxu0 0.0
  %2021 = vmatprep.subr.mxu0 0.0
  %2022 = vmatpush1.msra.mxu0 0.0
  %2023 = vmatprep.subr.mxu0 0.0
  %2024 = vmatpush1.msra.mxu0 0.0
  %2025 = vmatprep.subr.mxu0 0.0
  %2026 = vmatpush1.msra.mxu0 0.0
  %2027 = vmatprep.subr.mxu0 0.0
  %2028 = vmatpush1.msra.mxu0 0.0
  %2029 = vmatprep.subr.mxu0 0.0
  %2030 = vmatpush1.msra.mxu0 0.0
  %2031 = vmatprep.subr.mxu0 0.0
  %2032 = vmatpush1.msra.mxu0 0.0
  %2033 = vmatprep.subr.mxu0 0.0
  %2034 = vmatpush1.msra.mxu0 0.0
  %2035 = vmatprep.subr.mxu0 0.0
  %2036 = vmatpush1.msra.mxu0 0.0
  %2037 = vmatprep.subr.mxu0 0.0
  %2038 = vmatpush1.msra.mxu0 0.0
  %2039 = vmatprep.subr.mxu0 0.0
  %2040 = vmatpush1.msra.mxu0 0.0
  %2041 = vmatprep.subr.mxu0 0.0
  %2042 = vmatpush1.msra.mxu0 0.0
  %2043 = vmatprep.subr.mxu0 0.0
  %2044 = vmatpush1.msra.mxu0 0.0
  %2045 = vmatprep.subr.mxu0 0.0
  %2046 = vmatpush1.msra.mxu0 0.0
  %2047 = vmatprep.subr.mxu0 0.0
  %2048 = vmatpush1.msra.mxu0 0.0
  %2049 = vmatprep.subr.mxu0 0.0
  %2050 = vmatpush1.msra.mxu0 0.0
  %2051 = vmatprep.subr.mxu0 0.0
  %2052 = vmatpush1.msra.mxu0 0.0
  %2053 = vmatprep.subr.mxu0 0.0
  %2054 = vmatpush1.msra.mxu0 0.0
  %2055 = vmatprep.mubr.f32.mxu0 0.0
  %2056 = vmatmul.mubr.f32.gmra.mrb[0].mxu0 %v1986
  %v2057 = vpop.f32.mrb[0].mxu0
  %v2058 = vadd.f32 0.0, %v2057
  %v2059 = vpop.f32.mrb[0].mxu0
  %v2060 = vadd.f32 0.0, %v2059
  %2061 = vmatprep.mubr.f32.mxu0 0.0
  %2062 = vmatmul.mubr.f32.gmra.mrb[0].mxu0 %v1989
  %v2063 = vpop.f32.mrb[0].mxu0
  %v2064 = vadd.f32 0.0, %v2063
  %v2065 = vpop.f32.mrb[0].mxu0
  %v2066 = vadd.f32 0.0, %v2065
  %2067 = vdwg.mxu0
  %2068 = vmatprep.subr.mxu0 %v1976
  %2069 = vmatpush1.msra.mxu0 %v1975
  %2070 = vmatprep.subr.mxu0 0.0
  %2071 = vmatpush1.msra.mxu0 0.0
  %2072 = vmatprep.subr.mxu0 0.0
  %2073 = vmatpush1.msra.mxu0 0.0
  %2074 = vmatprep.subr.mxu0 0.0
  %2075 = vmatpush1.msra.mxu0 0.0
  %2076 = vmatprep.subr.mxu0 0.0
  %2077 = vmatpush1.msra.mxu0 0.0
  %2078 = vmatprep.subr.mxu0 0.0
  %2079 = vmatpush1.msra.mxu0 0.0
  %2080 = vmatprep.subr.mxu0 0.0
  %2081 = vmatpush1.msra.mxu0 0.0
  %2082 = vmatprep.subr.mxu0 0.0
  %2083 = vmatpush1.msra.mxu0 0.0
  %2084 = vmatprep.subr.mxu0 0.0
  %2085 = vmatpush1.msra.mxu0 0.0
  %2086 = vmatprep.subr.mxu0 0.0
  %2087 = vmatpush1.msra.mxu0 0.0
  %2088 = vmatprep.subr.mxu0 0.0
  %2089 = vmatpush1.msra.mxu0 0.0
  %2090 = vmatprep.subr.mxu0 0.0
  %2091 = vmatpush1.msra.mxu0 0.0
  %2092 = vmatprep.subr.mxu0 0.0
  %2093 = vmatpush1.msra.mxu0 0.0
  %2094 = vmatprep.subr.mxu0 0.0
  %2095 = vmatpush1.msra.mxu0 0.0
  %2096 = vmatprep.subr.mxu0 0.0
  %2097 = vmatpush1.msra.mxu0 0.0
  %2098 = vmatprep.subr.mxu0 0.0
  %2099 = vmatpush1.msra.mxu0 0.0
  %2100 = vmatprep.subr.mxu0 0.0
  %2101 = vmatpush1.msra.mxu0 0.0
  %2102 = vmatprep.subr.mxu0 0.0
  %2103 = vmatpush1.msra.mxu0 0.0
  %2104 = vmatprep.subr.mxu0 0.0
  %2105 = vmatpush1.msra.mxu0 0.0
  %2106 = vmatprep.subr.mxu0 0.0
  %2107 = vmatpush1.msra.mxu0 0.0
  %2108 = vmatprep.subr.mxu0 0.0
  %2109 = vmatpush1.msra.mxu0 0.0
  %2110 = vmatprep.subr.mxu0 0.0
  %2111 = vmatpush1.msra.mxu0 0.0
  %2112 = vmatprep.subr.mxu0 0.0
  %2113 = vmatpush1.msra.mxu0 0.0
  %2114 = vmatprep.subr.mxu0 0.0
  %2115 = vmatpush1.msra.mxu0 0.0
  %2116 = vmatprep.subr.mxu0 0.0
  %2117 = vmatpush1.msra.mxu0 0.0
  %2118 = vmatprep.subr.mxu0 0.0
  %2119 = vmatpush1.msra.mxu0 0.0
  %2120 = vmatprep.subr.mxu0 0.0
  %2121 = vmatpush1.msra.mxu0 0.0
  %2122 = vmatprep.subr.mxu0 0.0
  %2123 = vmatpush1.msra.mxu0 0.0
  %2124 = vmatprep.subr.mxu0 0.0
  %2125 = vmatpush1.msra.mxu0 0.0
  %2126 = vmatprep.subr.mxu0 0.0
  %2127 = vmatpush1.msra.mxu0 0.0
  %2128 = vmatprep.subr.mxu0 0.0
  %2129 = vmatpush1.msra.mxu0 0.0
  %2130 = vmatprep.subr.mxu0 0.0
  %2131 = vmatpush1.msra.mxu0 0.0
  %2132 = vmatprep.mubr.f32.mxu0 0.0
  %2133 = vmatmul.mubr.f32.gmra.mrb[0].mxu0 %v1986
  %v2134 = vpop.f32.mrb[0].mxu0
  %v2135 = vadd.f32 0.0, %v2134
  %v2136 = vpop.f32.mrb[0].mxu0
  %v2137 = vadd.f32 0.0, %v2136
  %2138 = vmatprep.mubr.f32.mxu0 0.0
  %2139 = vmatmul.mubr.f32.gmra.mrb[0].mxu0 %v1989
  %v2140 = vpop.f32.mrb[0].mxu0
  %v2141 = vadd.f32 0.0, %v2140
  %v2142 = vpop.f32.mrb[0].mxu0
  %v2143 = vadd.f32 0.0, %v2142
  %2144 = vdwg.mxu0
  %2145 = vmatprep.subr.mxu0 %v1978
  %2146 = vmatpush1.msra.mxu0 %v1977
  %2147 = vmatprep.subr.mxu0 0.0
  %2148 = vmatpush1.msra.mxu0 0.0
  %2149 = vmatprep.subr.mxu0 0.0
  %2150 = vmatpush1.msra.mxu0 0.0
  %2151 = vmatprep.subr.mxu0 0.0
  %2152 = vmatpush1.msra.mxu0 0.0
  %2153 = vmatprep.subr.mxu0 0.0
  %2154 = vmatpush1.msra.mxu0 0.0
  %2155 = vmatprep.subr.mxu0 0.0
  %2156 = vmatpush1.msra.mxu0 0.0
  %2157 = vmatprep.subr.mxu0 0.0
  %2158 = vmatpush1.msra.mxu0 0.0
  %2159 = vmatprep.subr.mxu0 0.0
  %2160 = vmatpush1.msra.mxu0 0.0
  %2161 = vmatprep.subr.mxu0 0.0
  %2162 = vmatpush1.msra.mxu0 0.0
  %2163 = vmatprep.subr.mxu0 0.0
  %2164 = vmatpush1.msra.mxu0 0.0
  %2165 = vmatprep.subr.mxu0 0.0
  %2166 = vmatpush1.msra.mxu0 0.0
  %2167 = vmatprep.subr.mxu0 0.0
  %2168 = vmatpush1.msra.mxu0 0.0
  %2169 = vmatprep.subr.mxu0 0.0
  %2170 = vmatpush1.msra.mxu0 0.0
  %2171 = vmatprep.subr.mxu0 0.0
  %2172 = vmatpush1.msra.mxu0 0.0
  %2173 = vmatprep.subr.mxu0 0.0
  %2174 = vmatpush1.msra.mxu0 0.0
  %2175 = vmatprep.subr.mxu0 0.0
  %2176 = vmatpush1.msra.mxu0 0.0
  %2177 = vmatprep.subr.mxu0 0.0
  %2178 = vmatpush1.msra.mxu0 0.0
  %2179 = vmatprep.subr.mxu0 0.0
  %2180 = vmatpush1.msra.mxu0 0.0
  %2181 = vmatprep.subr.mxu0 0.0
  %2182 = vmatpush1.msra.mxu0 0.0
  %2183 = vmatprep.subr.mxu0 0.0
  %2184 = vmatpush1.msra.mxu0 0.0
  %2185 = vmatprep.subr.mxu0 0.0
  %2186 = vmatpush1.msra.mxu0 0.0
  %2187 = vmatprep.subr.mxu0 0.0
  %2188 = vmatpush1.msra.mxu0 0.0
  %2189 = vmatprep.subr.mxu0 0.0
  %2190 = vmatpush1.msra.mxu0 0.0
  %2191 = vmatprep.subr.mxu0 0.0
  %2192 = vmatpush1.msra.mxu0 0.0
  %2193 = vmatprep.subr.mxu0 0.0
  %2194 = vmatpush1.msra.mxu0 0.0
  %2195 = vmatprep.subr.mxu0 0.0
  %2196 = vmatpush1.msra.mxu0 0.0
  %2197 = vmatprep.subr.mxu0 0.0
  %2198 = vmatpush1.msra.mxu0 0.0
  %2199 = vmatprep.subr.mxu0 0.0
  %2200 = vmatpush1.msra.mxu0 0.0
  %2201 = vmatprep.subr.mxu0 0.0
  %2202 = vmatpush1.msra.mxu0 0.0
  %2203 = vmatprep.subr.mxu0 0.0
  %2204 = vmatpush1.msra.mxu0 0.0
  %2205 = vmatprep.subr.mxu0 0.0
  %2206 = vmatpush1.msra.mxu0 0.0
  %2207 = vmatprep.subr.mxu0 0.0
  %2208 = vmatpush1.msra.mxu0 0.0
  %2209 = vmatprep.mubr.f32.mxu0 0.0
  %2210 = vmatmul.mubr.f32.gmra.mrb[0].mxu0 %v1986
  %v2211 = vpop.f32.mrb[0].mxu0
  %v2212 = vadd.f32 0.0, %v2211
  %v2213 = vpop.f32.mrb[0].mxu0
  %v2214 = vadd.f32 0.0, %v2213
  %2215 = vmatprep.mubr.f32.mxu0 0.0
  %2216 = vmatmul.mubr.f32.gmra.mrb[0].mxu0 %v1989
  %v2217 = vpop.f32.mrb[0].mxu0
  %v2218 = vadd.f32 0.0, %v2217
  %v2219 = vpop.f32.mrb[0].mxu0
  %v2220 = vadd.f32 0.0, %v2219
  %2221 = vdwg.mxu0
  %v2222 = vadd.f32 %v1943, %v2058
  %v2223 = vadd.f32 %v1944, %v2060
  %v2224 = vadd.f32 %v1945, %v2135
  %v2225 = vadd.f32 %v1946, %v2137
  %v2226 = vadd.f32 %v1947, %v2212
  %v2227 = vadd.f32 %v1948, %v2214
  %v2228 = vadd.f32 %v1949, %v2064
  %v2229 = vadd.f32 %v1950, %v2066
  %v2230 = vadd.f32 %v1951, %v2141
  %v2231 = vadd.f32 %v1952, %v2143
  %v2232 = vadd.f32 %v1953, %v2218
  %v2233 = vadd.f32 %v1954, %v2220
  %s2234 = scalar_lea.vmem %s2, 128
  %v2235 = vld [vmem:[%s2234] sm:$0xff]
  %v2236 = vld [vmem:[%s2234 + $0x8] sm:$0xff]
  %2237 = vrot.lane.b32.xlu0 %v39, 90
  %v2238 = vpop.permute.xlu0 %2237
  %2239 = vrot.lane.b32.xlu0 %v40, 90
  %v2240 = vpop.permute.xlu0 %2239
  %2241 = vrot.lane.b32.xlu0 %v41, 90
  %v2242 = vpop.permute.xlu0 %2241
  %2243 = vrot.lane.b32.xlu0 %v42, 90
  %v2244 = vpop.permute.xlu0 %2243
  %2245 = vrot.lane.b32.xlu0 %v43, 90
  %v2246 = vpop.permute.xlu0 %2245
  %2247 = vrot.lane.b32.xlu0 %v44, 90
  %v2248 = vpop.permute.xlu0 %2247
  %2249 = vrot.lane.b32.xlu0 %v45, 90
  %v2250 = vpop.permute.xlu0 %2249
  %vm2251 = vcmask 736256
  %v2252 = vsel %vm2251, %v2238, %v2240
  %v2253 = vsel %vm2251, %v2240, %v2242
  %v2254 = vsel %vm2251, %v2242, %v2244
  %v2255 = vsel %vm2251, %v2244, %v2246
  %v2256 = vsel %vm2251, %v2246, %v2248
  %v2257 = vsel %vm2251, %v2248, %v2250
  %v2265 = vsel %vm85, %v2235, 0
  %v2268 = vsel %vm85, %v2236, 0
  %2270 = vmatprep.subr.mxu0 %v2253
  %2271 = vmatpush1.msra.mxu0 %v2252
  %2272 = vmatprep.subr.mxu0 0.0
  %2273 = vmatpush1.msra.mxu0 0.0
  %2274 = vmatprep.subr.mxu0 0.0
  %2275 = vmatpush1.msra.mxu0 0.0
  %2276 = vmatprep.subr.mxu0 0.0
  %2277 = vmatpush1.msra.mxu0 0.0
  %2278 = vmatprep.subr.mxu0 0.0
  %2279 = vmatpush1.msra.mxu0 0.0
  %2280 = vmatprep.subr.mxu0 0.0
  %2281 = vmatpush1.msra.mxu0 0.0
  %2282 = vmatprep.subr.mxu0 0.0
  %2283 = vmatpush1.msra.mxu0 0.0
  %2284 = vmatprep.subr.mxu0 0.0
  %2285 = vmatpush1.msra.mxu0 0.0
  %2286 = vmatprep.subr.mxu0 0.0
  %2287 = vmatpush1.msra.mxu0 0.0
  %2288 = vmatprep.subr.mxu0 0.0
  %2289 = vmatpush1.msra.mxu0 0.0
  %2290 = vmatprep.subr.mxu0 0.0
  %2291 = vmatpush1.msra.mxu0 0.0
  %2292 = vmatprep.subr.mxu0 0.0
  %2293 = vmatpush1.msra.mxu0 0.0
  %2294 = vmatprep.subr.mxu0 0.0
  %2295 = vmatpush1.msra.mxu0 0.0
  %2296 = vmatprep.subr.mxu0 0.0
  %2297 = vmatpush1.msra.mxu0 0.0
  %2298 = vmatprep.subr.mxu0 0.0
  %2299 = vmatpush1.msra.mxu0 0.0
  %2300 = vmatprep.subr.mxu0 0.0
  %2301 = vmatpush1.msra.mxu0 0.0
  %2302 = vmatprep.subr.mxu0 0.0
  %2303 = vmatpush1.msra.mxu0 0.0
  %2304 = vmatprep.subr.mxu0 0.0
  %2305 = vmatpush1.msra.mxu0 0.0
  %2306 = vmatprep.subr.mxu0 0.0
  %2307 = vmatpush1.msra.mxu0 0.0
  %2308 = vmatprep.subr.mxu0 0.0
  %2309 = vmatpush1.msra.mxu0 0.0
  %2310 = vmatprep.subr.mxu0 0.0
  %2311 = vmatpush1.msra.mxu0 0.0
  %2312 = vmatprep.subr.mxu0 0.0
  %2313 = vmatpush1.msra.mxu0 0.0
  %2314 = vmatprep.subr.mxu0 0.0
  %2315 = vmatpush1.msra.mxu0 0.0
  %2316 = vmatprep.subr.mxu0 0.0
  %2317 = vmatpush1.msra.mxu0 0.0
  %2318 = vmatprep.subr.mxu0 0.0
  %2319 = vmatpush1.msra.mxu0 0.0
  %2320 = vmatprep.subr.mxu0 0.0
  %2321 = vmatpush1.msra.mxu0 0.0
  %2322 = vmatprep.subr.mxu0 0.0
  %2323 = vmatpush1.msra.mxu0 0.0
  %2324 = vmatprep.subr.mxu0 0.0
  %2325 = vmatpush1.msra.mxu0 0.0
  %2326 = vmatprep.subr.mxu0 0.0
  %2327 = vmatpush1.msra.mxu0 0.0
  %2328 = vmatprep.subr.mxu0 0.0
  %2329 = vmatpush1.msra.mxu0 0.0
  %2330 = vmatprep.subr.mxu0 0.0
  %2331 = vmatpush1.msra.mxu0 0.0
  %2332 = vmatprep.subr.mxu0 0.0
  %2333 = vmatpush1.msra.mxu0 0.0
  %2334 = vmatprep.mubr.f32.mxu0 0.0
  %2335 = vmatmul.mubr.f32.gmra.mrb[0].mxu0 %v2265
  %v2336 = vpop.f32.mrb[0].mxu0
  %v2337 = vadd.f32 0.0, %v2336
  %v2338 = vpop.f32.mrb[0].mxu0
  %v2339 = vadd.f32 0.0, %v2338
  %2340 = vmatprep.mubr.f32.mxu0 0.0
  %2341 = vmatmul.mubr.f32.gmra.mrb[0].mxu0 %v2268
  %v2342 = vpop.f32.mrb[0].mxu0
  %v2343 = vadd.f32 0.0, %v2342
  %v2344 = vpop.f32.mrb[0].mxu0
  %v2345 = vadd.f32 0.0, %v2344
  %2346 = vdwg.mxu0
  %2347 = vmatprep.subr.mxu0 %v2255
  %2348 = vmatpush1.msra.mxu0 %v2254
  %2349 = vmatprep.subr.mxu0 0.0
  %2350 = vmatpush1.msra.mxu0 0.0
  %2351 = vmatprep.subr.mxu0 0.0
  %2352 = vmatpush1.msra.mxu0 0.0
  %2353 = vmatprep.subr.mxu0 0.0
  %2354 = vmatpush1.msra.mxu0 0.0
  %2355 = vmatprep.subr.mxu0 0.0
  %2356 = vmatpush1.msra.mxu0 0.0
  %2357 = vmatprep.subr.mxu0 0.0
  %2358 = vmatpush1.msra.mxu0 0.0
  %2359 = vmatprep.subr.mxu0 0.0
  %2360 = vmatpush1.msra.mxu0 0.0
  %2361 = vmatprep.subr.mxu0 0.0
  %2362 = vmatpush1.msra.mxu0 0.0
  %2363 = vmatprep.subr.mxu0 0.0
  %2364 = vmatpush1.msra.mxu0 0.0
  %2365 = vmatprep.subr.mxu0 0.0
  %2366 = vmatpush1.msra.mxu0 0.0
  %2367 = vmatprep.subr.mxu0 0.0
  %2368 = vmatpush1.msra.mxu0 0.0
  %2369 = vmatprep.subr.mxu0 0.0
  %2370 = vmatpush1.msra.mxu0 0.0
  %2371 = vmatprep.subr.mxu0 0.0
  %2372 = vmatpush1.msra.mxu0 0.0
  %2373 = vmatprep.subr.mxu0 0.0
  %2374 = vmatpush1.msra.mxu0 0.0
  %2375 = vmatprep.subr.mxu0 0.0
  %2376 = vmatpush1.msra.mxu0 0.0
  %2377 = vmatprep.subr.mxu0 0.0
  %2378 = vmatpush1.msra.mxu0 0.0
  %2379 = vmatprep.subr.mxu0 0.0
  %2380 = vmatpush1.msra.mxu0 0.0
  %2381 = vmatprep.subr.mxu0 0.0
  %2382 = vmatpush1.msra.mxu0 0.0
  %2383 = vmatprep.subr.mxu0 0.0
  %2384 = vmatpush1.msra.mxu0 0.0
  %2385 = vmatprep.subr.mxu0 0.0
  %2386 = vmatpush1.msra.mxu0 0.0
  %2387 = vmatprep.subr.mxu0 0.0
  %2388 = vmatpush1.msra.mxu0 0.0
  %2389 = vmatprep.subr.mxu0 0.0
  %2390 = vmatpush1.msra.mxu0 0.0
  %2391 = vmatprep.subr.mxu0 0.0
  %2392 = vmatpush1.msra.mxu0 0.0
  %2393 = vmatprep.subr.mxu0 0.0
  %2394 = vmatpush1.msra.mxu0 0.0
  %2395 = vmatprep.subr.mxu0 0.0
  %2396 = vmatpush1.msra.mxu0 0.0
  %2397 = vmatprep.subr.mxu0 0.0
  %2398 = vmatpush1.msra.mxu0 0.0
  %2399 = vmatprep.subr.mxu0 0.0
  %2400 = vmatpush1.msra.mxu0 0.0
  %2401 = vmatprep.subr.mxu0 0.0
  %2402 = vmatpush1.msra.mxu0 0.0
  %2403 = vmatprep.subr.mxu0 0.0
  %2404 = vmatpush1.msra.mxu0 0.0
  %2405 = vmatprep.subr.mxu0 0.0
  %2406 = vmatpush1.msra.mxu0 0.0
  %2407 = vmatprep.subr.mxu0 0.0
  %2408 = vmatpush1.msra.mxu0 0.0
  %2409 = vmatprep.subr.mxu0 0.0
  %2410 = vmatpush1.msra.mxu0 0.0
  %2411 = vmatprep.mubr.f32.mxu0 0.0
  %2412 = vmatmul.mubr.f32.gmra.mrb[0].mxu0 %v2265
  %v2413 = vpop.f32.mrb[0].mxu0
  %v2414 = vadd.f32 0.0, %v2413
  %v2415 = vpop.f32.mrb[0].mxu0
  %v2416 = vadd.f32 0.0, %v2415
  %2417 = vmatprep.mubr.f32.mxu0 0.0
  %2418 = vmatmul.mubr.f32.gmra.mrb[0].mxu0 %v2268
  %v2419 = vpop.f32.mrb[0].mxu0
  %v2420 = vadd.f32 0.0, %v2419
  %v2421 = vpop.f32.mrb[0].mxu0
  %v2422 = vadd.f32 0.0, %v2421
  %2423 = vdwg.mxu0
  %2424 = vmatprep.subr.mxu0 %v2257
  %2425 = vmatpush1.msra.mxu0 %v2256
  %2426 = vmatprep.subr.mxu0 0.0
  %2427 = vmatpush1.msra.mxu0 0.0
  %2428 = vmatprep.subr.mxu0 0.0
  %2429 = vmatpush1.msra.mxu0 0.0
  %2430 = vmatprep.subr.mxu0 0.0
  %2431 = vmatpush1.msra.mxu0 0.0
  %2432 = vmatprep.subr.mxu0 0.0
  %2433 = vmatpush1.msra.mxu0 0.0
  %2434 = vmatprep.subr.mxu0 0.0
  %2435 = vmatpush1.msra.mxu0 0.0
  %2436 = vmatprep.subr.mxu0 0.0
  %2437 = vmatpush1.msra.mxu0 0.0
  %2438 = vmatprep.subr.mxu0 0.0
  %2439 = vmatpush1.msra.mxu0 0.0
  %2440 = vmatprep.subr.mxu0 0.0
  %2441 = vmatpush1.msra.mxu0 0.0
  %2442 = vmatprep.subr.mxu0 0.0
  %2443 = vmatpush1.msra.mxu0 0.0
  %2444 = vmatprep.subr.mxu0 0.0
  %2445 = vmatpush1.msra.mxu0 0.0
  %2446 = vmatprep.subr.mxu0 0.0
  %2447 = vmatpush1.msra.mxu0 0.0
  %2448 = vmatprep.subr.mxu0 0.0
  %2449 = vmatpush1.msra.mxu0 0.0
  %2450 = vmatprep.subr.mxu0 0.0
  %2451 = vmatpush1.msra.mxu0 0.0
  %2452 = vmatprep.subr.mxu0 0.0
  %2453 = vmatpush1.msra.mxu0 0.0
  %2454 = vmatprep.subr.mxu0 0.0
  %2455 = vmatpush1.msra.mxu0 0.0
  %2456 = vmatprep.subr.mxu0 0.0
  %2457 = vmatpush1.msra.mxu0 0.0
  %2458 = vmatprep.subr.mxu0 0.0
  %2459 = vmatpush1.msra.mxu0 0.0
  %2460 = vmatprep.subr.mxu0 0.0
  %2461 = vmatpush1.msra.mxu0 0.0
  %2462 = vmatprep.subr.mxu0 0.0
  %2463 = vmatpush1.msra.mxu0 0.0
  %2464 = vmatprep.subr.mxu0 0.0
  %2465 = vmatpush1.msra.mxu0 0.0
  %2466 = vmatprep.subr.mxu0 0.0
  %2467 = vmatpush1.msra.mxu0 0.0
  %2468 = vmatprep.subr.mxu0 0.0
  %2469 = vmatpush1.msra.mxu0 0.0
  %2470 = vmatprep.subr.mxu0 0.0
  %2471 = vmatpush1.msra.mxu0 0.0
  %2472 = vmatprep.subr.mxu0 0.0
  %2473 = vmatpush1.msra.mxu0 0.0
  %2474 = vmatprep.subr.mxu0 0.0
  %2475 = vmatpush1.msra.mxu0 0.0
  %2476 = vmatprep.subr.mxu0 0.0
  %2477 = vmatpush1.msra.mxu0 0.0
  %2478 = vmatprep.subr.mxu0 0.0
  %2479 = vmatpush1.msra.mxu0 0.0
  %2480 = vmatprep.subr.mxu0 0.0
  %2481 = vmatpush1.msra.mxu0 0.0
  %2482 = vmatprep.subr.mxu0 0.0
  %2483 = vmatpush1.msra.mxu0 0.0
  %2484 = vmatprep.subr.mxu0 0.0
  %2485 = vmatpush1.msra.mxu0 0.0
  %2486 = vmatprep.subr.mxu0 0.0
  %2487 = vmatpush1.msra.mxu0 0.0
  %2488 = vmatprep.mubr.f32.mxu0 0.0
  %2489 = vmatmul.mubr.f32.gmra.mrb[0].mxu0 %v2265
  %v2490 = vpop.f32.mrb[0].mxu0
  %v2491 = vadd.f32 0.0, %v2490
  %v2492 = vpop.f32.mrb[0].mxu0
  %v2493 = vadd.f32 0.0, %v2492
  %2494 = vmatprep.mubr.f32.mxu0 0.0
  %2495 = vmatmul.mubr.f32.gmra.mrb[0].mxu0 %v2268
  %v2496 = vpop.f32.mrb[0].mxu0
  %v2497 = vadd.f32 0.0, %v2496
  %v2498 = vpop.f32.mrb[0].mxu0
  %v2499 = vadd.f32 0.0, %v2498
  %2500 = vdwg.mxu0
  %v2501 = vadd.f32 %v2222, %v2337
  %v2502 = vadd.f32 %v2223, %v2339
  %v2503 = vadd.f32 %v2224, %v2414
  %v2504 = vadd.f32 %v2225, %v2416
  %v2505 = vadd.f32 %v2226, %v2491
  %v2506 = vadd.f32 %v2227, %v2493
  %v2507 = vadd.f32 %v2228, %v2343
  %v2508 = vadd.f32 %v2229, %v2345
  %v2509 = vadd.f32 %v2230, %v2420
  %v2510 = vadd.f32 %v2231, %v2422
  %v2511 = vadd.f32 %v2232, %v2497
  %v2512 = vadd.f32 %v2233, %v2499
  %v2513 = vld [vmem:[%s3] sm:$0xff]
  %v2514 = vld [vmem:[%s3 + $0x8] sm:$0xff]
  %2516 = vset.pattern.permute.xlu0 0
  %2517 = vperm.xlu0 %2516, %v2513
  %v2518 = vpop.permute.xlu0 %2517
  %2521 = vset.pattern.permute.xlu0 0
  %2522 = vperm.xlu0 %2521, %v2514
  %v2523 = vpop.permute.xlu0 %2522
  %v2525 = vadd.f32 %v2501, %v2518
  %v2526 = vadd.f32 %v2502, %v2518
  %v2527 = vadd.f32 %v2503, %v2518
  %v2528 = vadd.f32 %v2504, %v2518
  %v2529 = vadd.f32 %v2505, %v2518
  %v2530 = vadd.f32 %v2506, %v2518
  %v2531 = vadd.f32 %v2507, %v2523
  %v2532 = vadd.f32 %v2508, %v2523
  %v2533 = vadd.f32 %v2509, %v2523
  %v2534 = vadd.f32 %v2510, %v2523
  %v2535 = vadd.f32 %v2511, %v2523
  %v2536 = vadd.f32 %v2512, %v2523
  %v2537 = vlaneseq
  %v2538 = vshrl.u32 %v2537, 7
  %v2539 = vadd.s32 %v2538, 8
  %vm2540 = vcmp.ge.s32.totalorder %v2538, 8
  %vm2541 = vcmp.ge.s32.totalorder %v2539, 8
  %vm2542 = vcmp.lt.s32.totalorder %v2538, 16
  %vm2543 = vcmp.lt.s32.totalorder %v2539, 16
  %vm2544 = vmand %vm2540, %vm2542
  %vm2545 = vmand %vm2541, %vm2543
  %v2546 = vand.u32 2147483647, %v2525
  %v2547 = vand.u32 2147483647, %v2526
  %v2548 = vand.u32 2147483647, %v2527
  %v2549 = vand.u32 2147483647, %v2528
  %v2550 = vand.u32 2147483647, %v2529
  %v2551 = vand.u32 2147483647, %v2530
  %v2552 = vand.u32 2147483647, %v2531
  %v2553 = vand.u32 2147483647, %v2532
  %v2554 = vand.u32 2147483647, %v2533
  %v2555 = vand.u32 2147483647, %v2534
  %v2556 = vand.u32 2147483647, %v2535
  %v2557 = vand.u32 2147483647, %v2536
  %v2558 = vsel %vm2544, %v2546, %v2525
  %v2559 = vsel %vm2544, %v2547, %v2526
  %v2560 = vsel %vm2544, %v2548, %v2527
  %v2561 = vsel %vm2544, %v2549, %v2528
  %v2562 = vsel %vm2544, %v2550, %v2529
  %v2563 = vsel %vm2544, %v2551, %v2530
  %v2564 = vsel %vm2545, %v2552, %v2531
  %v2565 = vsel %vm2545, %v2553, %v2532
  %v2566 = vsel %vm2545, %v2554, %v2533
  %v2567 = vsel %vm2545, %v2555, %v2534
  %v2568 = vsel %vm2545, %v2556, %v2535
  %v2569 = vsel %vm2545, %v2557, %v2536
  %2570 = vst [vmem:[%s4] sm:$0xff] %v2558
  %2571 = vst [vmem:[%s4 + $0x8] sm:$0xff] %v2559
  %2572 = vst [vmem:[%s4 + $0x10] sm:$0xff] %v2560
  %2573 = vst [vmem:[%s4 + $0x18] sm:$0xff] %v2561
  %2574 = vst [vmem:[%s4 + $0x20] sm:$0xff] %v2562
  %2575 = vst [vmem:[%s4 + $0x28] sm:$0xff] %v2563
  %2576 = vst [vmem:[%s4 + $0x30] sm:$0xff] %v2564
  %2577 = vst [vmem:[%s4 + $0x38] sm:$0xff] %v2565
  %2578 = vst [vmem:[%s4 + $0x40] sm:$0xff] %v2566
  %2579 = vst [vmem:[%s4 + $0x48] sm:$0xff] %v2567
  %2580 = vst [vmem:[%s4 + $0x50] sm:$0xff] %v2568
  %2581 = vst [vmem:[%s4 + $0x58] sm:$0xff] %v2569
  // Predicated region
  $region18: #{random_variable_conv2d.1} parent=0 // pred_check
    _
  $region19: #{random_variable_conv2d.1} parent=0 // pred_check_branch
    %2583 = sbr.rel (0) target = $region21
  $region20: #{random_variable_conv2d.1} parent=0 // pred_region
    _
  $region21: #{random_variable_conv2d.1} parent=0 // pred_fallthru
    _
  // Predicated region
  $region22: #{random_variable_conv2d.1} parent=0 // pred_check
    _
  $region23: #{random_variable_conv2d.1} parent=0 // pred_check_branch
    %2585 = sbr.rel (0) target = $region25
  $region24: #{random_variable_conv2d.1} parent=0 // pred_region
    _
  $region25: #{random_variable_conv2d.1} parent=0 // pred_fallthru
    _

</llo_original>
